<compile_context>
chip_gen: v7x
topology: tpu7x:2x2x1
jax: 0.10.0
libtpu: 0.0.40
codegen_flags: <defaults>
</compile_context>

<pallas_src>
import functools

import jax
import jax.numpy as jnp
from jax.experimental import pallas as pl
from jax.experimental.pallas import tpu as pltpu


def _attention_kernel(x_ref, wqkv_ref, wout_ref, bout_ref, o_ref, *,
                      batch, seq, heads, dim_head):
    # x_ref    : (b*n, dim)          in compute dtype (f32 or bf16)
    # wqkv_ref : (dim, 3*inner)      Q columns pre-scaled by dim_head**-0.5
    # wout_ref : (inner, dim)
    # bout_ref : (1, dim)            f32
    # o_ref    : (b*n, dim)
    bn = batch * seq
    inner = heads * dim_head
    mxu_dtype = x_ref.dtype  # dtype fed to the MXU (bf16 on v6e/v7x fast path)

    x = x_ref[...]          # (bn, dim)
    wqkv = wqkv_ref[...]    # (dim, 3*inner)
    wout = wout_ref[...]    # (inner, dim)
    bout = bout_ref[...]    # (1, dim)

    # ---- (1) QKV projection: single lane-dense 2D matmul, f32 accumulate.
    qkv = jnp.dot(x, wqkv, preferred_element_type=jnp.float32)   # (bn, 3*inner)

    # Split q/k/v and heads with static lane slices (heads unrolled at trace
    # time); stack heads on a leading batch axis -> (heads*batch, n, d).
    def split_heads(base):
        parts = [
            qkv[:, base + h * dim_head: base + (h + 1) * dim_head]
            .reshape(batch, seq, dim_head)
            for h in range(heads)
        ]
        return jnp.concatenate(parts, axis=0).astype(mxu_dtype)  # (h*b, n, d)

    q = split_heads(0)              # scale already folded into the weights
    k = split_heads(inner)
    v = split_heads(2 * inner)

    # ---- (2) Scores + numerically stable softmax (f32 elementwise).
    dots = jnp.einsum('gqd,gkd->gqk', q, k,
                      preferred_element_type=jnp.float32)        # (h*b, n, n)
    dots = dots - jnp.max(dots, axis=-1, keepdims=True)
    e = jnp.exp(dots)
    attn = e * pl.reciprocal(jnp.sum(e, axis=-1, keepdims=True), approx=False)

    out = jnp.einsum('gqk,gkd->gqd', attn.astype(mxu_dtype), v,
                     preferred_element_type=jnp.float32)         # (h*b, n, d)

    # ---- (3) Output projection: reassemble to (bn, inner) (tiny lane concat
    #          in 'b n (h d)' order) then one matmul + bias.
    out_heads = [
        out[h * batch:(h + 1) * batch].reshape(bn, dim_head)
        for h in range(heads)
    ]
    out_flat = jnp.concatenate(out_heads, axis=-1).astype(mxu_dtype)  # (bn, inner)

    y = jnp.dot(out_flat, wout, preferred_element_type=jnp.float32)   # (bn, dim)
    y = y + bout.astype(jnp.float32)
    o_ref[...] = y.astype(o_ref.dtype)


def attention_forward(x, w_qkv, w_out, b_out, *, heads, dim_head,
                      compute_dtype=None):
    """x: (b, n, dim); w_qkv: (dim, 3*inner); w_out: (inner, dim); b_out: (1, dim).

    compute_dtype: dtype of the MXU operands (None -> x.dtype). Pass
    jnp.bfloat16 on v6e/v7x for the fast MXU path; softmax stays f32 inside.
    """
    b, n, dim = x.shape
    inner = heads * dim_head
    scale = dim_head ** (-0.5)

    # Fold the softmax scale into the Q columns of the (dim, 3*inner) weight so
    # the QKV projection is one flat lane-dense matmul with zero in-kernel cost
    # for the scaling.
    col_scale = jnp.concatenate([
        jnp.full((inner,), scale, w_qkv.dtype),
        jnp.ones((2 * inner,), w_qkv.dtype),
    ])
    wqkv_scaled = w_qkv * col_scale[None, :]

    if compute_dtype is None:
        compute_dtype = x.dtype
    x2 = x.reshape(b * n, dim).astype(compute_dtype)
    wqkv_c = wqkv_scaled.astype(compute_dtype)
    wout_c = w_out.astype(compute_dtype)

    kernel = functools.partial(_attention_kernel, batch=b, seq=n,
                               heads=heads, dim_head=dim_head)

    y2 = pl.pallas_call(
        kernel,
        out_shape=jax.ShapeDtypeStruct((b * n, dim), x.dtype),
        grid=(1,),
        in_specs=[
            pl.BlockSpec((b * n, dim), lambda i: (0, 0)),
            pl.BlockSpec((dim, 3 * inner), lambda i: (0, 0)),
            pl.BlockSpec((inner, dim), lambda i: (0, 0)),
            pl.BlockSpec((1, dim), lambda i: (0, 0)),
        ],
        out_specs=pl.BlockSpec((b * n, dim), lambda i: (0, 0)),
        compiler_params=pltpu.CompilerParams(
            dimension_semantics=("arbitrary",)),
    )(x2, wqkv_c, wout_c, b_out)

    return y2.reshape(b, n, dim)


def attention_reference(x, w_qkv, w_out, b_out, *, heads, dim_head):
    """Pure-JAX reference mirroring the PyTorch forward (mask=None, eval mode)."""
    b, n, dim = x.shape
    inner = heads * dim_head
    scale = dim_head ** (-0.5)
    hi = jax.lax.Precision.HIGHEST
    qkv = jnp.einsum('bnd,de->bne', x, w_qkv, precision=hi)
    q, k, v = jnp.split(qkv, 3, axis=-1)

    def split_heads(t):
        return t.reshape(b, n, heads, dim_head).transpose(0, 2, 1, 3)

    q, k, v = map(split_heads, (q, k, v))
    dots = jnp.einsum('bhid,bhjd->bhij', q, k, precision=hi) * scale
    attn = jax.nn.softmax(dots, axis=-1)
    out = jnp.einsum('bhij,bhjd->bhid', attn, v, precision=hi)
    out = out.transpose(0, 2, 1, 3).reshape(b, n, inner)
    return jnp.einsum('bne,ed->bnd', out, w_out, precision=hi) + b_out[0]


if __name__ == "__main__":
    # Small shapes consistent with the module's forward: x is (b, n, dim).
    batch, seq, dim = 2, 8, 32
    heads, dim_head = 4, 8
    inner = heads * dim_head

    key = jax.random.PRNGKey(0)
    kx, kqkv, kwo, kbo = jax.random.split(key, 4)

    x = jax.random.normal(kx, (batch, seq, dim), dtype=jnp.float32)

    # Deterministic "PyTorch-default-like" uniform init, stored as (in, out).
    lim_qkv = 1.0 / (dim ** 0.5)
    lim_out = 1.0 / (inner ** 0.5)
    w_qkv = jax.random.uniform(kqkv, (dim, 3 * inner), jnp.float32,
                               -lim_qkv, lim_qkv)
    w_out = jax.random.uniform(kwo, (inner, dim), jnp.float32,
                               -lim_out, lim_out)
    b_out = jax.random.uniform(kbo, (1, dim), jnp.float32,
                               -lim_out, lim_out)

    y_ref = attention_reference(x, w_qkv, w_out, b_out,
                                heads=heads, dim_head=dim_head)

    # f32 MXU-operand path (v5e-friendly), exact reciprocal.
    y = attention_forward(x, w_qkv, w_out, b_out,
                          heads=heads, dim_head=dim_head)
    y = jax.block_until_ready(y)
    assert y.shape == (batch, seq, dim)
    assert jnp.allclose(y, y_ref, atol=1e-2, rtol=1e-2), "f32 mismatch vs ref"

    # bf16 MXU-operand path (v6e/v7x fast path); softmax stays f32 inside.
    y_bf16 = attention_forward(x, w_qkv, w_out, b_out,
                               heads=heads, dim_head=dim_head,
                               compute_dtype=jnp.bfloat16)
    y_bf16 = jax.block_until_ready(y_bf16)
    assert jnp.allclose(y_bf16, y_ref, atol=6e-2, rtol=6e-2), "bf16 mismatch vs ref"

    print("KERNEL_OK")
</pallas_src>

<mosaic_0001>
module attributes {stable_mosaic.version = 11 : i64} {
  func.func @_attention_kernel(%arg0: i32, %arg1: memref<16x32xf32, #tpu.memory_space<vmem>>, %arg2: memref<32x96xf32, #tpu.memory_space<vmem>>, %arg3: memref<32x32xf32, #tpu.memory_space<vmem>>, %arg4: memref<1x32xf32, #tpu.memory_space<vmem>>, %arg5: memref<16x32xf32, #tpu.memory_space<vmem>>) attributes {dimension_semantics = [#tpu.dimension_semantics<arbitrary>], iteration_bounds = array<i64: 1>, scalar_prefetch = 0 : i64, scratch_operands = 0 : i64, tpu.core_type = #tpu.core_type<tc>, window_params = [{pipeline_mode = #tpu.pipeline_mode<synchronous>, transform_indices = @transform_0, window_bounds = array<i64: 16, 32>}, {pipeline_mode = #tpu.pipeline_mode<synchronous>, transform_indices = @transform_1, window_bounds = array<i64: 32, 96>}, {pipeline_mode = #tpu.pipeline_mode<synchronous>, transform_indices = @transform_2, window_bounds = array<i64: 32, 32>}, {pipeline_mode = #tpu.pipeline_mode<synchronous>, transform_indices = @transform_3, window_bounds = array<i64: 1, 32>}, {pipeline_mode = #tpu.pipeline_mode<synchronous>, transform_indices = @transform_4, window_bounds = array<i64: 16, 32>}]} {
    %c0 = arith.constant 0 : index
    %c0_0 = arith.constant 0 : index
    %0 = vector.load %arg1[%c0, %c0_0] : memref<16x32xf32, #tpu.memory_space<vmem>>, vector<16x32xf32>
    %c0_1 = arith.constant 0 : index
    %c0_2 = arith.constant 0 : index
    %1 = vector.load %arg2[%c0_1, %c0_2] : memref<32x96xf32, #tpu.memory_space<vmem>>, vector<32x96xf32>
    %c0_3 = arith.constant 0 : index
    %c0_4 = arith.constant 0 : index
    %2 = vector.load %arg3[%c0_3, %c0_4] : memref<32x32xf32, #tpu.memory_space<vmem>>, vector<32x32xf32>
    %c0_5 = arith.constant 0 : index
    %c0_6 = arith.constant 0 : index
    %3 = vector.load %arg4[%c0_5, %c0_6] : memref<1x32xf32, #tpu.memory_space<vmem>>, vector<1x32xf32>
    %cst = arith.constant dense<0.000000e+00> : vector<16x96xf32>
    %4 = tpu.matmul %0, %1, %cst {dimension_numbers = #tpu.dot_dimension_numbers<[1], [0], [0], [1], [0, 0, 1, 1], [], []>} : vector<16x32xf32>, vector<32x96xf32>, vector<16x96xf32> -> vector<16x96xf32>
    %5 = vector.extract_strided_slice %4 {offsets = [0, 0], sizes = [16, 8], strides = [1, 1]} : vector<16x96xf32> to vector<16x8xf32>
    %6 = vector.shape_cast %5 : vector<16x8xf32> to vector<2x8x8xf32>
    %7 = vector.extract_strided_slice %4 {offsets = [0, 8], sizes = [16, 8], strides = [1, 1]} : vector<16x96xf32> to vector<16x8xf32>
    %8 = vector.shape_cast %7 : vector<16x8xf32> to vector<2x8x8xf32>
    %9 = vector.extract_strided_slice %4 {offsets = [0, 16], sizes = [16, 8], strides = [1, 1]} : vector<16x96xf32> to vector<16x8xf32>
    %10 = vector.shape_cast %9 : vector<16x8xf32> to vector<2x8x8xf32>
    %11 = vector.extract_strided_slice %4 {offsets = [0, 24], sizes = [16, 8], strides = [1, 1]} : vector<16x96xf32> to vector<16x8xf32>
    %12 = vector.shape_cast %11 : vector<16x8xf32> to vector<2x8x8xf32>
    %13 = tpu.concatenate %6, %8, %10, %12 in 0 : vector<2x8x8xf32>, vector<2x8x8xf32>, vector<2x8x8xf32>, vector<2x8x8xf32> -> vector<8x8x8xf32>
    %14 = vector.extract_strided_slice %4 {offsets = [0, 32], sizes = [16, 8], strides = [1, 1]} : vector<16x96xf32> to vector<16x8xf32>
    %15 = vector.shape_cast %14 : vector<16x8xf32> to vector<2x8x8xf32>
    %16 = vector.extract_strided_slice %4 {offsets = [0, 40], sizes = [16, 8], strides = [1, 1]} : vector<16x96xf32> to vector<16x8xf32>
    %17 = vector.shape_cast %16 : vector<16x8xf32> to vector<2x8x8xf32>
    %18 = vector.extract_strided_slice %4 {offsets = [0, 48], sizes = [16, 8], strides = [1, 1]} : vector<16x96xf32> to vector<16x8xf32>
    %19 = vector.shape_cast %18 : vector<16x8xf32> to vector<2x8x8xf32>
    %20 = vector.extract_strided_slice %4 {offsets = [0, 56], sizes = [16, 8], strides = [1, 1]} : vector<16x96xf32> to vector<16x8xf32>
    %21 = vector.shape_cast %20 : vector<16x8xf32> to vector<2x8x8xf32>
    %22 = tpu.concatenate %15, %17, %19, %21 in 0 : vector<2x8x8xf32>, vector<2x8x8xf32>, vector<2x8x8xf32>, vector<2x8x8xf32> -> vector<8x8x8xf32>
    %23 = vector.extract_strided_slice %4 {offsets = [0, 64], sizes = [16, 8], strides = [1, 1]} : vector<16x96xf32> to vector<16x8xf32>
    %24 = vector.shape_cast %23 : vector<16x8xf32> to vector<2x8x8xf32>
    %25 = vector.extract_strided_slice %4 {offsets = [0, 72], sizes = [16, 8], strides = [1, 1]} : vector<16x96xf32> to vector<16x8xf32>
    %26 = vector.shape_cast %25 : vector<16x8xf32> to vector<2x8x8xf32>
    %27 = vector.extract_strided_slice %4 {offsets = [0, 80], sizes = [16, 8], strides = [1, 1]} : vector<16x96xf32> to vector<16x8xf32>
    %28 = vector.shape_cast %27 : vector<16x8xf32> to vector<2x8x8xf32>
    %29 = vector.extract_strided_slice %4 {offsets = [0, 88], sizes = [16, 8], strides = [1, 1]} : vector<16x96xf32> to vector<16x8xf32>
    %30 = vector.shape_cast %29 : vector<16x8xf32> to vector<2x8x8xf32>
    %31 = tpu.concatenate %24, %26, %28, %30 in 0 : vector<2x8x8xf32>, vector<2x8x8xf32>, vector<2x8x8xf32>, vector<2x8x8xf32> -> vector<8x8x8xf32>
    "tpu.trace_start"() <{level = 10 : i32, message = "gqd,gkd->gqk"}> : () -> ()
    %cst_7 = arith.constant dense<0.000000e+00> : vector<8x8x8xf32>
    %32 = tpu.matmul %13, %22, %cst_7 {dimension_numbers = #tpu.dot_dimension_numbers<[2], [2], [1], [1], [0, 0, 0, 1, 1, 1], [0], [0]>} : vector<8x8x8xf32>, vector<8x8x8xf32>, vector<8x8x8xf32> -> vector<8x8x8xf32>
    "tpu.trace_stop"() : () -> ()
    %cst_8 = arith.constant dense<0xFF800000> : vector<8x8xf32>
    %33 = vector.multi_reduction <maximumf>, %32, %cst_8 [2] : vector<8x8x8xf32> to vector<8x8xf32>
    %34 = vector.shape_cast %33 : vector<8x8xf32> to vector<8x8x1xf32>
    %35 = vector.broadcast %34 : vector<8x8x1xf32> to vector<8x8x8xf32>
    %36 = arith.subf %32, %35 : vector<8x8x8xf32>
    %37 = math.exp %36 : vector<8x8x8xf32>
    %cst_9 = arith.constant dense<0.000000e+00> : vector<8x8xf32>
    %38 = vector.multi_reduction <add>, %37, %cst_9 [2] : vector<8x8x8xf32> to vector<8x8xf32>
    %39 = vector.shape_cast %38 : vector<8x8xf32> to vector<8x8x1xf32>
    %40 = tpu.reciprocal %39 : vector<8x8x1xf32> -> vector<8x8x1xf32>
    %41 = vector.broadcast %40 : vector<8x8x1xf32> to vector<8x8x8xf32>
    %42 = arith.mulf %37, %41 : vector<8x8x8xf32>
    "tpu.trace_start"() <{level = 10 : i32, message = "gqk,gkd->gqd"}> : () -> ()
    %cst_10 = arith.constant dense<0.000000e+00> : vector<8x8x8xf32>
    %43 = tpu.matmul %42, %31, %cst_10 {dimension_numbers = #tpu.dot_dimension_numbers<[2], [1], [1], [2], [0, 0, 0, 1, 1, 2], [0], [0]>} : vector<8x8x8xf32>, vector<8x8x8xf32>, vector<8x8x8xf32> -> vector<8x8x8xf32>
    "tpu.trace_stop"() : () -> ()
    %44 = vector.extract_strided_slice %43 {offsets = [0, 0, 0], sizes = [2, 8, 8], strides = [1, 1, 1]} : vector<8x8x8xf32> to vector<2x8x8xf32>
    %45 = vector.shape_cast %44 : vector<2x8x8xf32> to vector<16x8xf32>
    %46 = vector.extract_strided_slice %43 {offsets = [2, 0, 0], sizes = [2, 8, 8], strides = [1, 1, 1]} : vector<8x8x8xf32> to vector<2x8x8xf32>
    %47 = vector.shape_cast %46 : vector<2x8x8xf32> to vector<16x8xf32>
    %48 = vector.extract_strided_slice %43 {offsets = [4, 0, 0], sizes = [2, 8, 8], strides = [1, 1, 1]} : vector<8x8x8xf32> to vector<2x8x8xf32>
    %49 = vector.shape_cast %48 : vector<2x8x8xf32> to vector<16x8xf32>
    %50 = vector.extract_strided_slice %43 {offsets = [6, 0, 0], sizes = [2, 8, 8], strides = [1, 1, 1]} : vector<8x8x8xf32> to vector<2x8x8xf32>
    %51 = vector.shape_cast %50 : vector<2x8x8xf32> to vector<16x8xf32>
    %52 = tpu.concatenate %45, %47, %49, %51 in 1 : vector<16x8xf32>, vector<16x8xf32>, vector<16x8xf32>, vector<16x8xf32> -> vector<16x32xf32>
    %cst_11 = arith.constant dense<0.000000e+00> : vector<16x32xf32>
    %53 = tpu.matmul %52, %2, %cst_11 {dimension_numbers = #tpu.dot_dimension_numbers<[1], [0], [0], [1], [0, 0, 1, 1], [], []>} : vector<16x32xf32>, vector<32x32xf32>, vector<16x32xf32> -> vector<16x32xf32>
    %54 = vector.broadcast %3 : vector<1x32xf32> to vector<16x32xf32>
    %55 = arith.addf %53, %54 : vector<16x32xf32>
    %c0_12 = arith.constant 0 : index
    %c0_13 = arith.constant 0 : index
    %56 = vector.load %arg5[%c0_12, %c0_13] : memref<16x32xf32, #tpu.memory_space<vmem>>, vector<16x32xf32>
    tpu.vector_store %arg5[%c0_12, %c0_13], %55 {strides = array<i32>} : memref<16x32xf32, #tpu.memory_space<vmem>>, vector<16x32xf32>,
    return
  }
  func.func @transform_0(%arg0: i32) -> (i32, i32) {
    %c0_i32 = arith.constant 0 : i32
    %c0_i32_0 = arith.constant 0 : i32
    %c0_i32_1 = arith.constant 0 : i32
    return %c0_i32, %c0_i32_0 : i32, i32
  }
  func.func @transform_1(%arg0: i32) -> (i32, i32) {
    %c0_i32 = arith.constant 0 : i32
    %c0_i32_0 = arith.constant 0 : i32
    %c0_i32_1 = arith.constant 0 : i32
    return %c0_i32, %c0_i32_0 : i32, i32
  }
  func.func @transform_2(%arg0: i32) -> (i32, i32) {
    %c0_i32 = arith.constant 0 : i32
    %c0_i32_0 = arith.constant 0 : i32
    %c0_i32_1 = arith.constant 0 : i32
    return %c0_i32, %c0_i32_0 : i32, i32
  }
  func.func @transform_3(%arg0: i32) -> (i32, i32) {
    %c0_i32 = arith.constant 0 : i32
    %c0_i32_0 = arith.constant 0 : i32
    %c0_i32_1 = arith.constant 0 : i32
    return %c0_i32, %c0_i32_0 : i32, i32
  }
  func.func @transform_4(%arg0: i32) -> (i32, i32) {
    %c0_i32 = arith.constant 0 : i32
    %c0_i32_0 = arith.constant 0 : i32
    %c0_i32_1 = arith.constant 0 : i32
    return %c0_i32, %c0_i32_0 : i32, i32
  }
}

</mosaic_0001>

<llo_original>
// kernel: tpu_custom_call.1
$region0: #{tpu_custom_call.1}
  #allocation0 [shape = 'u32[]', space=smem, size = 0x4, offset = 0x4, fixed_abs, tag = 'smem constant byte address 0x4 - core index']
  #allocation1 [shape = 'u32[144,128]{1,0:T(1,128)}', space=vmem, size = 0x12000, scoped, tag = 'internal scratch']
  %s0 = inlined_call_operand.hbm [shape: f32[16,32], index: 0, kind: input, shape index: {}]
  %s1 = inlined_call_operand.hbm [shape: f32[32,96], index: 1, kind: input, shape index: {}]
  %s2 = inlined_call_operand.hbm [shape: f32[32,32], index: 2, kind: input, shape index: {}]
  %s3 = inlined_call_operand.vmem [shape: f32[1,32], index: 3, kind: input, shape index: {}]
  %s4 = inlined_call_operand.hbm [shape: f32[16,32], index: 4, kind: output, shape index: {}]
  %s5 = sld [smem:[#allocation0]]
  $region38: #{tpu_custom_call.1} parent=0
    _
  %s7 = ssub.s32 1, %s5
  %s8 = scalar_select 0, %s7, %s5
  $region1: #{tpu_custom_call.1} parent=0
    #allocation2 [shape = 'u8[8192]{0}', space=vmem, size = 0x2000, scoped, tag = 'input window, operand 0, single buffered']
    #allocation3 [shape = 's32[1]{0}', space=sflag, size = 0x4, scoped, tag = 'scoped memory for tpu_custom_call.1']
    #allocation4 [shape = 's32[1]{0}', space=sflag, size = 0x4, scoped, tag = 'scoped memory for tpu_custom_call.1']
    #allocation5 [shape = 'u8[16384]{0}', space=vmem, size = 0x4000, scoped, tag = 'input window, operand 1, single buffered']
    #allocation6 [shape = 's32[1]{0}', space=sflag, size = 0x4, scoped, tag = 'scoped memory for tpu_custom_call.1']
    #allocation7 [shape = 'u8[16384]{0}', space=vmem, size = 0x4000, scoped, tag = 'input window, operand 2, single buffered']
    #allocation8 [shape = 'u8[8192]{0}', space=vmem, size = 0x2000, scoped, tag = 'output window, operand 0, single buffered']
    %9 = vsyncpa [#allocation3], 0
    %10 = vsyncpa [#allocation6], 0
    %11 = vsyncpa [#allocation4], 0
    // Predicated region
    $region2: #{tpu_custom_call.1} parent=1 // pred_check
      _
    $region3: #{tpu_custom_call.1} parent=1 // pred_check_branch
      %13 = sbr.rel (0) target = $region5
    $region4: #{tpu_custom_call.1} parent=1 // pred_region
      %s15 = ssub.s32 256, 256
      %16 = vsyncadd [#allocation3], %s15
      %s17 = sshll.u32 [#allocation2], 4
      %s18 = int_to_ptr.vmem [resolvable:$true] %s17
      %23 = dma.hbm_to_vmem [thread:$0]  %s0, 256, %s18, [#allocation3], 128, 128, 8
    $region5: #{tpu_custom_call.1} parent=1 // pred_fallthru
      _
    // Predicated region
    $region6: #{tpu_custom_call.1} parent=1 // pred_check
      _
    $region7: #{tpu_custom_call.1} parent=1 // pred_check_branch
      %25 = sbr.rel (0) target = $region9
    $region8: #{tpu_custom_call.1} parent=1 // pred_region
      %s27 = ssub.s32 512, 512
      %28 = vsyncadd [#allocation6], %s27
      %s29 = sshll.u32 [#allocation5], 4
      %s30 = int_to_ptr.vmem [resolvable:$true] %s29
      %35 = dma.hbm_to_vmem [thread:$0]  %s1, 512, %s30, [#allocation6], 128, 128, 8
    $region9: #{tpu_custom_call.1} parent=1 // pred_fallthru
      _
    // Predicated region
    $region10: #{tpu_custom_call.1} parent=1 // pred_check
      _
    $region11: #{tpu_custom_call.1} parent=1 // pred_check_branch
      %37 = sbr.rel (0) target = $region13
    $region12: #{tpu_custom_call.1} parent=1 // pred_region
      %s39 = ssub.s32 512, 512
      %40 = vsyncadd [#allocation6], %s39
      %s41 = sshll.u32 [#allocation7], 4
      %s42 = int_to_ptr.vmem [resolvable:$true] %s41
      %47 = dma.hbm_to_vmem [thread:$0]  %s2, 512, %s42, [#allocation6], 128, 128, 8
    $region13: #{tpu_custom_call.1} parent=1 // pred_fallthru
      _
    // Predicated region
    $region14: #{tpu_custom_call.1} parent=1 // pred_check
      _
    $region15: #{tpu_custom_call.1} parent=1 // pred_check_branch
      %49 = sbr.rel (0) target = $region17
    $region16: #{tpu_custom_call.1} parent=1 // pred_region
      _
    $region17: #{tpu_custom_call.1} parent=1 // pred_fallthru
      _
    // Predicated region
    $region18: #{tpu_custom_call.1} parent=1 // pred_check
      _
    $region19: #{tpu_custom_call.1} parent=1 // pred_check_branch
      %51 = sbr.rel (0) target = $region21
    $region20: #{tpu_custom_call.1} parent=1 // pred_region
      %52 = dma.done [#allocation3], 256
    $region21: #{tpu_custom_call.1} parent=1 // pred_fallthru
      _
    // Predicated region
    $region22: #{tpu_custom_call.1} parent=1 // pred_check
      _
    $region23: #{tpu_custom_call.1} parent=1 // pred_check_branch
      %54 = sbr.rel (0) target = $region25
    $region24: #{tpu_custom_call.1} parent=1 // pred_region
      %55 = dma.done [#allocation6], 512
    $region25: #{tpu_custom_call.1} parent=1 // pred_fallthru
      _
    // Predicated region
    $region26: #{tpu_custom_call.1} parent=1 // pred_check
      _
    $region27: #{tpu_custom_call.1} parent=1 // pred_check_branch
      %57 = sbr.rel (0) target = $region29
    $region28: #{tpu_custom_call.1} parent=1 // pred_region
      %58 = dma.done [#allocation6], 512
    $region29: #{tpu_custom_call.1} parent=1 // pred_fallthru
      _
    %v59 = vld [vmem:[#allocation2] sm:$0xff]
    %v60 = vld [vmem:[#allocation2 + $0x8] sm:$0xff]
    %v61 = vld [vmem:[#allocation5] sm:$0xff]
    %v62 = vld [vmem:[#allocation5 + $0x8] sm:$0xff]
    %v63 = vld [vmem:[#allocation5 + $0x10] sm:$0xff]
    %v64 = vld [vmem:[#allocation5 + $0x18] sm:$0xff]
    %v65 = vld [vmem:[#allocation7] sm:$0xff]
    %v66 = vld [vmem:[#allocation7 + $0x8] sm:$0xff]
    %v67 = vld [vmem:[#allocation7 + $0x10] sm:$0xff]
    %v68 = vld [vmem:[#allocation7 + $0x18] sm:$0xff]
    %v69 = vld [vmem:[%s3] sm:$0x1]
    %vm70 = vcmask 261120
    %v72 = vsel %vm70, %v59, 0
    %v75 = vsel %vm70, %v60, 0
    %77 = vmatprep.subr.mxu0 0.0
    %78 = vmatpush1.msra.mxu0 %v61
    %79 = vmatprep.subr.mxu0 0.0
    %80 = vmatpush1.msra.mxu0 %v62
    %81 = vmatprep.subr.mxu0 0.0
    %82 = vmatpush1.msra.mxu0 %v63
    %83 = vmatprep.subr.mxu0 0.0
    %84 = vmatpush1.msra.mxu0 %v64
    %85 = vmatprep.subr.mxu0 0.0
    %86 = vmatpush1.msra.mxu0 0.0
    %87 = vmatprep.subr.mxu0 0.0
    %88 = vmatpush1.msra.mxu0 0.0
    %89 = vmatprep.subr.mxu0 0.0
    %90 = vmatpush1.msra.mxu0 0.0
    %91 = vmatprep.subr.mxu0 0.0
    %92 = vmatpush1.msra.mxu0 0.0
    %93 = vmatprep.subr.mxu0 0.0
    %94 = vmatpush1.msra.mxu0 0.0
    %95 = vmatprep.subr.mxu0 0.0
    %96 = vmatpush1.msra.mxu0 0.0
    %97 = vmatprep.subr.mxu0 0.0
    %98 = vmatpush1.msra.mxu0 0.0
    %99 = vmatprep.subr.mxu0 0.0
    %100 = vmatpush1.msra.mxu0 0.0
    %101 = vmatprep.subr.mxu0 0.0
    %102 = vmatpush1.msra.mxu0 0.0
    %103 = vmatprep.subr.mxu0 0.0
    %104 = vmatpush1.msra.mxu0 0.0
    %105 = vmatprep.subr.mxu0 0.0
    %106 = vmatpush1.msra.mxu0 0.0
    %107 = vmatprep.subr.mxu0 0.0
    %108 = vmatpush1.msra.mxu0 0.0
    %109 = vmatprep.subr.mxu0 0.0
    %110 = vmatpush1.msra.mxu0 0.0
    %111 = vmatprep.subr.mxu0 0.0
    %112 = vmatpush1.msra.mxu0 0.0
    %113 = vmatprep.subr.mxu0 0.0
    %114 = vmatpush1.msra.mxu0 0.0
    %115 = vmatprep.subr.mxu0 0.0
    %116 = vmatpush1.msra.mxu0 0.0
    %117 = vmatprep.subr.mxu0 0.0
    %118 = vmatpush1.msra.mxu0 0.0
    %119 = vmatprep.subr.mxu0 0.0
    %120 = vmatpush1.msra.mxu0 0.0
    %121 = vmatprep.subr.mxu0 0.0
    %122 = vmatpush1.msra.mxu0 0.0
    %123 = vmatprep.subr.mxu0 0.0
    %124 = vmatpush1.msra.mxu0 0.0
    %125 = vmatprep.subr.mxu0 0.0
    %126 = vmatpush1.msra.mxu0 0.0
    %127 = vmatprep.subr.mxu0 0.0
    %128 = vmatpush1.msra.mxu0 0.0
    %129 = vmatprep.subr.mxu0 0.0
    %130 = vmatpush1.msra.mxu0 0.0
    %131 = vmatprep.subr.mxu0 0.0
    %132 = vmatpush1.msra.mxu0 0.0
    %133 = vmatprep.subr.mxu0 0.0
    %134 = vmatpush1.msra.mxu0 0.0
    %135 = vmatprep.subr.mxu0 0.0
    %136 = vmatpush1.msra.mxu0 0.0
    %137 = vmatprep.subr.mxu0 0.0
    %138 = vmatpush1.msra.mxu0 0.0
    %139 = vmatprep.subr.mxu0 0.0
    %140 = vmatpush1.msra.mxu0 0.0
    %141 = vmatprep.mubr.f32.mxu0 0.0
    %142 = vmatmul.mubr.f32.gmra.mrb[0].mxu0 %v72
    %v143 = vpop.f32.mrb[0].mxu0
    %v144 = vadd.f32 0.0, %v143
    %v145 = vpop.f32.mrb[0].mxu0
    %146 = vmatprep.mubr.f32.mxu0 0.0
    %147 = vmatmul.mubr.f32.gmra.mrb[0].mxu0 %v75
    %v148 = vpop.f32.mrb[0].mxu0
    %v149 = vadd.f32 0.0, %v148
    %v150 = vpop.f32.mrb[0].mxu0
    %151 = vdwg.mxu0
    %154 = vrot.lane.b32.xlu0 %v144, 120
    %v155 = vpop.permute.xlu0 %154
    %156 = vrot.lane.b32.xlu0 %v149, 120
    %v157 = vpop.permute.xlu0 %156
    %158 = vrot.lane.b32.xlu0 %v144, 112
    %v159 = vpop.permute.xlu0 %158
    %160 = vrot.lane.b32.xlu0 %v149, 112
    %v161 = vpop.permute.xlu0 %160
    %162 = vrot.lane.b32.xlu0 %v144, 104
    %v163 = vpop.permute.xlu0 %162
    %164 = vrot.lane.b32.xlu0 %v149, 104
    %v165 = vpop.permute.xlu0 %164
    %166 = vrot.lane.b32.xlu0 %v144, 96
    %v167 = vpop.permute.xlu0 %166
    %vm168 = vcmask 64512
    %v169 = vsel %vm168, %v144, 0
    %v171 = vsel %vm168, %v167, 0
    %173 = vmatprep.subr.mxu0 0.0
    %174 = vmatpush1.xpose.msra.mxu0 %v171
    %175 = vmatprep.subr.mxu0 0.0
    %176 = vmatpush1.xpose.msra.mxu0 0.0
    %177 = vmatprep.subr.mxu0 0.0
    %178 = vmatpush1.xpose.msra.mxu0 0.0
    %179 = vmatprep.subr.mxu0 0.0
    %180 = vmatpush1.xpose.msra.mxu0 0.0
    %181 = vmatprep.subr.mxu0 0.0
    %182 = vmatpush1.xpose.msra.mxu0 0.0
    %183 = vmatprep.subr.mxu0 0.0
    %184 = vmatpush1.xpose.msra.mxu0 0.0
    %185 = vmatprep.subr.mxu0 0.0
    %186 = vmatpush1.xpose.msra.mxu0 0.0
    %187 = vmatprep.subr.mxu0 0.0
    %188 = vmatpush1.xpose.msra.mxu0 0.0
    %189 = vmatprep.subr.mxu0 0.0
    %190 = vmatpush1.xpose.msra.mxu0 0.0
    %191 = vmatprep.subr.mxu0 0.0
    %192 = vmatpush1.xpose.msra.mxu0 0.0
    %193 = vmatprep.subr.mxu0 0.0
    %194 = vmatpush1.xpose.msra.mxu0 0.0
    %195 = vmatprep.subr.mxu0 0.0
    %196 = vmatpush1.xpose.msra.mxu0 0.0
    %197 = vmatprep.subr.mxu0 0.0
    %198 = vmatpush1.xpose.msra.mxu0 0.0
    %199 = vmatprep.subr.mxu0 0.0
    %200 = vmatpush1.xpose.msra.mxu0 0.0
    %201 = vmatprep.subr.mxu0 0.0
    %202 = vmatpush1.xpose.msra.mxu0 0.0
    %203 = vmatprep.subr.mxu0 0.0
    %204 = vmatpush1.xpose.msra.mxu0 0.0
    %205 = vmatprep.subr.mxu0 0.0
    %206 = vmatpush1.xpose.msra.mxu0 0.0
    %207 = vmatprep.subr.mxu0 0.0
    %208 = vmatpush1.xpose.msra.mxu0 0.0
    %209 = vmatprep.subr.mxu0 0.0
    %210 = vmatpush1.xpose.msra.mxu0 0.0
    %211 = vmatprep.subr.mxu0 0.0
    %212 = vmatpush1.xpose.msra.mxu0 0.0
    %213 = vmatprep.subr.mxu0 0.0
    %214 = vmatpush1.xpose.msra.mxu0 0.0
    %215 = vmatprep.subr.mxu0 0.0
    %216 = vmatpush1.xpose.msra.mxu0 0.0
    %217 = vmatprep.subr.mxu0 0.0
    %218 = vmatpush1.xpose.msra.mxu0 0.0
    %219 = vmatprep.subr.mxu0 0.0
    %220 = vmatpush1.xpose.msra.mxu0 0.0
    %221 = vmatprep.subr.mxu0 0.0
    %222 = vmatpush1.xpose.msra.mxu0 0.0
    %223 = vmatprep.subr.mxu0 0.0
    %224 = vmatpush1.xpose.msra.mxu0 0.0
    %225 = vmatprep.subr.mxu0 0.0
    %226 = vmatpush1.xpose.msra.mxu0 0.0
    %227 = vmatprep.subr.mxu0 0.0
    %228 = vmatpush1.xpose.msra.mxu0 0.0
    %229 = vmatprep.subr.mxu0 0.0
    %230 = vmatpush1.xpose.msra.mxu0 0.0
    %231 = vmatprep.subr.mxu0 0.0
    %232 = vmatpush1.xpose.msra.mxu0 0.0
    %233 = vmatprep.subr.mxu0 0.0
    %234 = vmatpush1.xpose.msra.mxu0 0.0
    %235 = vmatprep.subr.mxu0 0.0
    %236 = vmatpush1.xpose.msra.mxu0 0.0
    %237 = vmatprep.mubr.f32.mxu0 0.0
    %238 = vmatmul.mubr.f32.gmra.mrb[0].mxu0 %v169
    %v239 = vpop.f32.mrb[0].mxu0
    %v240 = vadd.f32 0.0, %v239
    %v241 = vpop.f32.mrb[0].mxu0
    %242 = vdwg.mxu0
    %243 = vrot.lane.b32.xlu0 %v149, 96
    %v244 = vpop.permute.xlu0 %243
    %v245 = vsel %vm168, %v149, 0
    %v247 = vsel %vm168, %v244, 0
    %249 = vmatprep.subr.mxu0 0.0
    %250 = vmatpush1.xpose.msra.mxu0 %v247
    %251 = vmatprep.subr.mxu0 0.0
    %252 = vmatpush1.xpose.msra.mxu0 0.0
    %253 = vmatprep.subr.mxu0 0.0
    %254 = vmatpush1.xpose.msra.mxu0 0.0
    %255 = vmatprep.subr.mxu0 0.0
    %256 = vmatpush1.xpose.msra.mxu0 0.0
    %257 = vmatprep.subr.mxu0 0.0
    %258 = vmatpush1.xpose.msra.mxu0 0.0
    %259 = vmatprep.subr.mxu0 0.0
    %260 = vmatpush1.xpose.msra.mxu0 0.0
    %261 = vmatprep.subr.mxu0 0.0
    %262 = vmatpush1.xpose.msra.mxu0 0.0
    %263 = vmatprep.subr.mxu0 0.0
    %264 = vmatpush1.xpose.msra.mxu0 0.0
    %265 = vmatprep.subr.mxu0 0.0
    %266 = vmatpush1.xpose.msra.mxu0 0.0
    %267 = vmatprep.subr.mxu0 0.0
    %268 = vmatpush1.xpose.msra.mxu0 0.0
    %269 = vmatprep.subr.mxu0 0.0
    %270 = vmatpush1.xpose.msra.mxu0 0.0
    %271 = vmatprep.subr.mxu0 0.0
    %272 = vmatpush1.xpose.msra.mxu0 0.0
    %273 = vmatprep.subr.mxu0 0.0
    %274 = vmatpush1.xpose.msra.mxu0 0.0
    %275 = vmatprep.subr.mxu0 0.0
    %276 = vmatpush1.xpose.msra.mxu0 0.0
    %277 = vmatprep.subr.mxu0 0.0
    %278 = vmatpush1.xpose.msra.mxu0 0.0
    %279 = vmatprep.subr.mxu0 0.0
    %280 = vmatpush1.xpose.msra.mxu0 0.0
    %281 = vmatprep.subr.mxu0 0.0
    %282 = vmatpush1.xpose.msra.mxu0 0.0
    %283 = vmatprep.subr.mxu0 0.0
    %284 = vmatpush1.xpose.msra.mxu0 0.0
    %285 = vmatprep.subr.mxu0 0.0
    %286 = vmatpush1.xpose.msra.mxu0 0.0
    %287 = vmatprep.subr.mxu0 0.0
    %288 = vmatpush1.xpose.msra.mxu0 0.0
    %289 = vmatprep.subr.mxu0 0.0
    %290 = vmatpush1.xpose.msra.mxu0 0.0
    %291 = vmatprep.subr.mxu0 0.0
    %292 = vmatpush1.xpose.msra.mxu0 0.0
    %293 = vmatprep.subr.mxu0 0.0
    %294 = vmatpush1.xpose.msra.mxu0 0.0
    %295 = vmatprep.subr.mxu0 0.0
    %296 = vmatpush1.xpose.msra.mxu0 0.0
    %297 = vmatprep.subr.mxu0 0.0
    %298 = vmatpush1.xpose.msra.mxu0 0.0
    %299 = vmatprep.subr.mxu0 0.0
    %300 = vmatpush1.xpose.msra.mxu0 0.0
    %301 = vmatprep.subr.mxu0 0.0
    %302 = vmatpush1.xpose.msra.mxu0 0.0
    %303 = vmatprep.subr.mxu0 0.0
    %304 = vmatpush1.xpose.msra.mxu0 0.0
    %305 = vmatprep.subr.mxu0 0.0
    %306 = vmatpush1.xpose.msra.mxu0 0.0
    %307 = vmatprep.subr.mxu0 0.0
    %308 = vmatpush1.xpose.msra.mxu0 0.0
    %309 = vmatprep.subr.mxu0 0.0
    %310 = vmatpush1.xpose.msra.mxu0 0.0
    %311 = vmatprep.subr.mxu0 0.0
    %312 = vmatpush1.xpose.msra.mxu0 0.0
    %313 = vmatprep.mubr.f32.mxu0 0.0
    %314 = vmatmul.mubr.f32.gmra.mrb[0].mxu0 %v245
    %v315 = vpop.f32.mrb[0].mxu0
    %v316 = vadd.f32 0.0, %v315
    %v317 = vpop.f32.mrb[0].mxu0
    %318 = vdwg.mxu0
    %319 = vrot.lane.b32.xlu0 %v155, 96
    %v320 = vpop.permute.xlu0 %319
    %v321 = vsel %vm168, %v155, 0
    %v323 = vsel %vm168, %v320, 0
    %325 = vmatprep.subr.mxu0 0.0
    %326 = vmatpush1.xpose.msra.mxu0 %v323
    %327 = vmatprep.subr.mxu0 0.0
    %328 = vmatpush1.xpose.msra.mxu0 0.0
    %329 = vmatprep.subr.mxu0 0.0
    %330 = vmatpush1.xpose.msra.mxu0 0.0
    %331 = vmatprep.subr.mxu0 0.0
    %332 = vmatpush1.xpose.msra.mxu0 0.0
    %333 = vmatprep.subr.mxu0 0.0
    %334 = vmatpush1.xpose.msra.mxu0 0.0
    %335 = vmatprep.subr.mxu0 0.0
    %336 = vmatpush1.xpose.msra.mxu0 0.0
    %337 = vmatprep.subr.mxu0 0.0
    %338 = vmatpush1.xpose.msra.mxu0 0.0
    %339 = vmatprep.subr.mxu0 0.0
    %340 = vmatpush1.xpose.msra.mxu0 0.0
    %341 = vmatprep.subr.mxu0 0.0
    %342 = vmatpush1.xpose.msra.mxu0 0.0
    %343 = vmatprep.subr.mxu0 0.0
    %344 = vmatpush1.xpose.msra.mxu0 0.0
    %345 = vmatprep.subr.mxu0 0.0
    %346 = vmatpush1.xpose.msra.mxu0 0.0
    %347 = vmatprep.subr.mxu0 0.0
    %348 = vmatpush1.xpose.msra.mxu0 0.0
    %349 = vmatprep.subr.mxu0 0.0
    %350 = vmatpush1.xpose.msra.mxu0 0.0
    %351 = vmatprep.subr.mxu0 0.0
    %352 = vmatpush1.xpose.msra.mxu0 0.0
    %353 = vmatprep.subr.mxu0 0.0
    %354 = vmatpush1.xpose.msra.mxu0 0.0
    %355 = vmatprep.subr.mxu0 0.0
    %356 = vmatpush1.xpose.msra.mxu0 0.0
    %357 = vmatprep.subr.mxu0 0.0
    %358 = vmatpush1.xpose.msra.mxu0 0.0
    %359 = vmatprep.subr.mxu0 0.0
    %360 = vmatpush1.xpose.msra.mxu0 0.0
    %361 = vmatprep.subr.mxu0 0.0
    %362 = vmatpush1.xpose.msra.mxu0 0.0
    %363 = vmatprep.subr.mxu0 0.0
    %364 = vmatpush1.xpose.msra.mxu0 0.0
    %365 = vmatprep.subr.mxu0 0.0
    %366 = vmatpush1.xpose.msra.mxu0 0.0
    %367 = vmatprep.subr.mxu0 0.0
    %368 = vmatpush1.xpose.msra.mxu0 0.0
    %369 = vmatprep.subr.mxu0 0.0
    %370 = vmatpush1.xpose.msra.mxu0 0.0
    %371 = vmatprep.subr.mxu0 0.0
    %372 = vmatpush1.xpose.msra.mxu0 0.0
    %373 = vmatprep.subr.mxu0 0.0
    %374 = vmatpush1.xpose.msra.mxu0 0.0
    %375 = vmatprep.subr.mxu0 0.0
    %376 = vmatpush1.xpose.msra.mxu0 0.0
    %377 = vmatprep.subr.mxu0 0.0
    %378 = vmatpush1.xpose.msra.mxu0 0.0
    %379 = vmatprep.subr.mxu0 0.0
    %380 = vmatpush1.xpose.msra.mxu0 0.0
    %381 = vmatprep.subr.mxu0 0.0
    %382 = vmatpush1.xpose.msra.mxu0 0.0
    %383 = vmatprep.subr.mxu0 0.0
    %384 = vmatpush1.xpose.msra.mxu0 0.0
    %385 = vmatprep.subr.mxu0 0.0
    %386 = vmatpush1.xpose.msra.mxu0 0.0
    %387 = vmatprep.subr.mxu0 0.0
    %388 = vmatpush1.xpose.msra.mxu0 0.0
    %389 = vmatprep.mubr.f32.mxu0 0.0
    %390 = vmatmul.mubr.f32.gmra.mrb[0].mxu0 %v321
    %v391 = vpop.f32.mrb[0].mxu0
    %v392 = vadd.f32 0.0, %v391
    %v393 = vpop.f32.mrb[0].mxu0
    %394 = vdwg.mxu0
    %395 = vrot.lane.b32.xlu0 %v157, 96
    %v396 = vpop.permute.xlu0 %395
    %v397 = vsel %vm168, %v157, 0
    %v399 = vsel %vm168, %v396, 0
    %401 = vmatprep.subr.mxu0 0.0
    %402 = vmatpush1.xpose.msra.mxu0 %v399
    %403 = vmatprep.subr.mxu0 0.0
    %404 = vmatpush1.xpose.msra.mxu0 0.0
    %405 = vmatprep.subr.mxu0 0.0
    %406 = vmatpush1.xpose.msra.mxu0 0.0
    %407 = vmatprep.subr.mxu0 0.0
    %408 = vmatpush1.xpose.msra.mxu0 0.0
    %409 = vmatprep.subr.mxu0 0.0
    %410 = vmatpush1.xpose.msra.mxu0 0.0
    %411 = vmatprep.subr.mxu0 0.0
    %412 = vmatpush1.xpose.msra.mxu0 0.0
    %413 = vmatprep.subr.mxu0 0.0
    %414 = vmatpush1.xpose.msra.mxu0 0.0
    %415 = vmatprep.subr.mxu0 0.0
    %416 = vmatpush1.xpose.msra.mxu0 0.0
    %417 = vmatprep.subr.mxu0 0.0
    %418 = vmatpush1.xpose.msra.mxu0 0.0
    %419 = vmatprep.subr.mxu0 0.0
    %420 = vmatpush1.xpose.msra.mxu0 0.0
    %421 = vmatprep.subr.mxu0 0.0
    %422 = vmatpush1.xpose.msra.mxu0 0.0
    %423 = vmatprep.subr.mxu0 0.0
    %424 = vmatpush1.xpose.msra.mxu0 0.0
    %425 = vmatprep.subr.mxu0 0.0
    %426 = vmatpush1.xpose.msra.mxu0 0.0
    %427 = vmatprep.subr.mxu0 0.0
    %428 = vmatpush1.xpose.msra.mxu0 0.0
    %429 = vmatprep.subr.mxu0 0.0
    %430 = vmatpush1.xpose.msra.mxu0 0.0
    %431 = vmatprep.subr.mxu0 0.0
    %432 = vmatpush1.xpose.msra.mxu0 0.0
    %433 = vmatprep.subr.mxu0 0.0
    %434 = vmatpush1.xpose.msra.mxu0 0.0
    %435 = vmatprep.subr.mxu0 0.0
    %436 = vmatpush1.xpose.msra.mxu0 0.0
    %437 = vmatprep.subr.mxu0 0.0
    %438 = vmatpush1.xpose.msra.mxu0 0.0
    %439 = vmatprep.subr.mxu0 0.0
    %440 = vmatpush1.xpose.msra.mxu0 0.0
    %441 = vmatprep.subr.mxu0 0.0
    %442 = vmatpush1.xpose.msra.mxu0 0.0
    %443 = vmatprep.subr.mxu0 0.0
    %444 = vmatpush1.xpose.msra.mxu0 0.0
    %445 = vmatprep.subr.mxu0 0.0
    %446 = vmatpush1.xpose.msra.mxu0 0.0
    %447 = vmatprep.subr.mxu0 0.0
    %448 = vmatpush1.xpose.msra.mxu0 0.0
    %449 = vmatprep.subr.mxu0 0.0
    %450 = vmatpush1.xpose.msra.mxu0 0.0
    %451 = vmatprep.subr.mxu0 0.0
    %452 = vmatpush1.xpose.msra.mxu0 0.0
    %453 = vmatprep.subr.mxu0 0.0
    %454 = vmatpush1.xpose.msra.mxu0 0.0
    %455 = vmatprep.subr.mxu0 0.0
    %456 = vmatpush1.xpose.msra.mxu0 0.0
    %457 = vmatprep.subr.mxu0 0.0
    %458 = vmatpush1.xpose.msra.mxu0 0.0
    %459 = vmatprep.subr.mxu0 0.0
    %460 = vmatpush1.xpose.msra.mxu0 0.0
    %461 = vmatprep.subr.mxu0 0.0
    %462 = vmatpush1.xpose.msra.mxu0 0.0
    %463 = vmatprep.subr.mxu0 0.0
    %464 = vmatpush1.xpose.msra.mxu0 0.0
    %465 = vmatprep.mubr.f32.mxu0 0.0
    %466 = vmatmul.mubr.f32.gmra.mrb[0].mxu0 %v397
    %v467 = vpop.f32.mrb[0].mxu0
    %v468 = vadd.f32 0.0, %v467
    %v469 = vpop.f32.mrb[0].mxu0
    %470 = vdwg.mxu0
    %471 = vrot.lane.b32.xlu0 %v159, 96
    %v472 = vpop.permute.xlu0 %471
    %v473 = vsel %vm168, %v159, 0
    %v475 = vsel %vm168, %v472, 0
    %477 = vmatprep.subr.mxu0 0.0
    %478 = vmatpush1.xpose.msra.mxu0 %v475
    %479 = vmatprep.subr.mxu0 0.0
    %480 = vmatpush1.xpose.msra.mxu0 0.0
    %481 = vmatprep.subr.mxu0 0.0
    %482 = vmatpush1.xpose.msra.mxu0 0.0
    %483 = vmatprep.subr.mxu0 0.0
    %484 = vmatpush1.xpose.msra.mxu0 0.0
    %485 = vmatprep.subr.mxu0 0.0
    %486 = vmatpush1.xpose.msra.mxu0 0.0
    %487 = vmatprep.subr.mxu0 0.0
    %488 = vmatpush1.xpose.msra.mxu0 0.0
    %489 = vmatprep.subr.mxu0 0.0
    %490 = vmatpush1.xpose.msra.mxu0 0.0
    %491 = vmatprep.subr.mxu0 0.0
    %492 = vmatpush1.xpose.msra.mxu0 0.0
    %493 = vmatprep.subr.mxu0 0.0
    %494 = vmatpush1.xpose.msra.mxu0 0.0
    %495 = vmatprep.subr.mxu0 0.0
    %496 = vmatpush1.xpose.msra.mxu0 0.0
    %497 = vmatprep.subr.mxu0 0.0
    %498 = vmatpush1.xpose.msra.mxu0 0.0
    %499 = vmatprep.subr.mxu0 0.0
    %500 = vmatpush1.xpose.msra.mxu0 0.0
    %501 = vmatprep.subr.mxu0 0.0
    %502 = vmatpush1.xpose.msra.mxu0 0.0
    %503 = vmatprep.subr.mxu0 0.0
    %504 = vmatpush1.xpose.msra.mxu0 0.0
    %505 = vmatprep.subr.mxu0 0.0
    %506 = vmatpush1.xpose.msra.mxu0 0.0
    %507 = vmatprep.subr.mxu0 0.0
    %508 = vmatpush1.xpose.msra.mxu0 0.0
    %509 = vmatprep.subr.mxu0 0.0
    %510 = vmatpush1.xpose.msra.mxu0 0.0
    %511 = vmatprep.subr.mxu0 0.0
    %512 = vmatpush1.xpose.msra.mxu0 0.0
    %513 = vmatprep.subr.mxu0 0.0
    %514 = vmatpush1.xpose.msra.mxu0 0.0
    %515 = vmatprep.subr.mxu0 0.0
    %516 = vmatpush1.xpose.msra.mxu0 0.0
    %517 = vmatprep.subr.mxu0 0.0
    %518 = vmatpush1.xpose.msra.mxu0 0.0
    %519 = vmatprep.subr.mxu0 0.0
    %520 = vmatpush1.xpose.msra.mxu0 0.0
    %521 = vmatprep.subr.mxu0 0.0
    %522 = vmatpush1.xpose.msra.mxu0 0.0
    %523 = vmatprep.subr.mxu0 0.0
    %524 = vmatpush1.xpose.msra.mxu0 0.0
    %525 = vmatprep.subr.mxu0 0.0
    %526 = vmatpush1.xpose.msra.mxu0 0.0
    %527 = vmatprep.subr.mxu0 0.0
    %528 = vmatpush1.xpose.msra.mxu0 0.0
    %529 = vmatprep.subr.mxu0 0.0
    %530 = vmatpush1.xpose.msra.mxu0 0.0
    %531 = vmatprep.subr.mxu0 0.0
    %532 = vmatpush1.xpose.msra.mxu0 0.0
    %533 = vmatprep.subr.mxu0 0.0
    %534 = vmatpush1.xpose.msra.mxu0 0.0
    %535 = vmatprep.subr.mxu0 0.0
    %536 = vmatpush1.xpose.msra.mxu0 0.0
    %537 = vmatprep.subr.mxu0 0.0
    %538 = vmatpush1.xpose.msra.mxu0 0.0
    %539 = vmatprep.subr.mxu0 0.0
    %540 = vmatpush1.xpose.msra.mxu0 0.0
    %541 = vmatprep.mubr.f32.mxu0 0.0
    %542 = vmatmul.mubr.f32.gmra.mrb[0].mxu0 %v473
    %v543 = vpop.f32.mrb[0].mxu0
    %v544 = vadd.f32 0.0, %v543
    %v545 = vpop.f32.mrb[0].mxu0
    %546 = vdwg.mxu0
    %547 = vrot.lane.b32.xlu0 %v161, 96
    %v548 = vpop.permute.xlu0 %547
    %v549 = vsel %vm168, %v161, 0
    %v551 = vsel %vm168, %v548, 0
    %553 = vmatprep.subr.mxu0 0.0
    %554 = vmatpush1.xpose.msra.mxu0 %v551
    %555 = vmatprep.subr.mxu0 0.0
    %556 = vmatpush1.xpose.msra.mxu0 0.0
    %557 = vmatprep.subr.mxu0 0.0
    %558 = vmatpush1.xpose.msra.mxu0 0.0
    %559 = vmatprep.subr.mxu0 0.0
    %560 = vmatpush1.xpose.msra.mxu0 0.0
    %561 = vmatprep.subr.mxu0 0.0
    %562 = vmatpush1.xpose.msra.mxu0 0.0
    %563 = vmatprep.subr.mxu0 0.0
    %564 = vmatpush1.xpose.msra.mxu0 0.0
    %565 = vmatprep.subr.mxu0 0.0
    %566 = vmatpush1.xpose.msra.mxu0 0.0
    %567 = vmatprep.subr.mxu0 0.0
    %568 = vmatpush1.xpose.msra.mxu0 0.0
    %569 = vmatprep.subr.mxu0 0.0
    %570 = vmatpush1.xpose.msra.mxu0 0.0
    %571 = vmatprep.subr.mxu0 0.0
    %572 = vmatpush1.xpose.msra.mxu0 0.0
    %573 = vmatprep.subr.mxu0 0.0
    %574 = vmatpush1.xpose.msra.mxu0 0.0
    %575 = vmatprep.subr.mxu0 0.0
    %576 = vmatpush1.xpose.msra.mxu0 0.0
    %577 = vmatprep.subr.mxu0 0.0
    %578 = vmatpush1.xpose.msra.mxu0 0.0
    %579 = vmatprep.subr.mxu0 0.0
    %580 = vmatpush1.xpose.msra.mxu0 0.0
    %581 = vmatprep.subr.mxu0 0.0
    %582 = vmatpush1.xpose.msra.mxu0 0.0
    %583 = vmatprep.subr.mxu0 0.0
    %584 = vmatpush1.xpose.msra.mxu0 0.0
    %585 = vmatprep.subr.mxu0 0.0
    %586 = vmatpush1.xpose.msra.mxu0 0.0
    %587 = vmatprep.subr.mxu0 0.0
    %588 = vmatpush1.xpose.msra.mxu0 0.0
    %589 = vmatprep.subr.mxu0 0.0
    %590 = vmatpush1.xpose.msra.mxu0 0.0
    %591 = vmatprep.subr.mxu0 0.0
    %592 = vmatpush1.xpose.msra.mxu0 0.0
    %593 = vmatprep.subr.mxu0 0.0
    %594 = vmatpush1.xpose.msra.mxu0 0.0
    %595 = vmatprep.subr.mxu0 0.0
    %596 = vmatpush1.xpose.msra.mxu0 0.0
    %597 = vmatprep.subr.mxu0 0.0
    %598 = vmatpush1.xpose.msra.mxu0 0.0
    %599 = vmatprep.subr.mxu0 0.0
    %600 = vmatpush1.xpose.msra.mxu0 0.0
    %601 = vmatprep.subr.mxu0 0.0
    %602 = vmatpush1.xpose.msra.mxu0 0.0
    %603 = vmatprep.subr.mxu0 0.0
    %604 = vmatpush1.xpose.msra.mxu0 0.0
    %605 = vmatprep.subr.mxu0 0.0
    %606 = vmatpush1.xpose.msra.mxu0 0.0
    %607 = vmatprep.subr.mxu0 0.0
    %608 = vmatpush1.xpose.msra.mxu0 0.0
    %609 = vmatprep.subr.mxu0 0.0
    %610 = vmatpush1.xpose.msra.mxu0 0.0
    %611 = vmatprep.subr.mxu0 0.0
    %612 = vmatpush1.xpose.msra.mxu0 0.0
    %613 = vmatprep.subr.mxu0 0.0
    %614 = vmatpush1.xpose.msra.mxu0 0.0
    %615 = vmatprep.subr.mxu0 0.0
    %616 = vmatpush1.xpose.msra.mxu0 0.0
    %617 = vmatprep.mubr.f32.mxu0 0.0
    %618 = vmatmul.mubr.f32.gmra.mrb[0].mxu0 %v549
    %v619 = vpop.f32.mrb[0].mxu0
    %v620 = vadd.f32 0.0, %v619
    %v621 = vpop.f32.mrb[0].mxu0
    %622 = vdwg.mxu0
    %623 = vrot.lane.b32.xlu0 %v163, 96
    %v624 = vpop.permute.xlu0 %623
    %v625 = vsel %vm168, %v163, 0
    %v627 = vsel %vm168, %v624, 0
    %629 = vmatprep.subr.mxu0 0.0
    %630 = vmatpush1.xpose.msra.mxu0 %v627
    %631 = vmatprep.subr.mxu0 0.0
    %632 = vmatpush1.xpose.msra.mxu0 0.0
    %633 = vmatprep.subr.mxu0 0.0
    %634 = vmatpush1.xpose.msra.mxu0 0.0
    %635 = vmatprep.subr.mxu0 0.0
    %636 = vmatpush1.xpose.msra.mxu0 0.0
    %637 = vmatprep.subr.mxu0 0.0
    %638 = vmatpush1.xpose.msra.mxu0 0.0
    %639 = vmatprep.subr.mxu0 0.0
    %640 = vmatpush1.xpose.msra.mxu0 0.0
    %641 = vmatprep.subr.mxu0 0.0
    %642 = vmatpush1.xpose.msra.mxu0 0.0
    %643 = vmatprep.subr.mxu0 0.0
    %644 = vmatpush1.xpose.msra.mxu0 0.0
    %645 = vmatprep.subr.mxu0 0.0
    %646 = vmatpush1.xpose.msra.mxu0 0.0
    %647 = vmatprep.subr.mxu0 0.0
    %648 = vmatpush1.xpose.msra.mxu0 0.0
    %649 = vmatprep.subr.mxu0 0.0
    %650 = vmatpush1.xpose.msra.mxu0 0.0
    %651 = vmatprep.subr.mxu0 0.0
    %652 = vmatpush1.xpose.msra.mxu0 0.0
    %653 = vmatprep.subr.mxu0 0.0
    %654 = vmatpush1.xpose.msra.mxu0 0.0
    %655 = vmatprep.subr.mxu0 0.0
    %656 = vmatpush1.xpose.msra.mxu0 0.0
    %657 = vmatprep.subr.mxu0 0.0
    %658 = vmatpush1.xpose.msra.mxu0 0.0
    %659 = vmatprep.subr.mxu0 0.0
    %660 = vmatpush1.xpose.msra.mxu0 0.0
    %661 = vmatprep.subr.mxu0 0.0
    %662 = vmatpush1.xpose.msra.mxu0 0.0
    %663 = vmatprep.subr.mxu0 0.0
    %664 = vmatpush1.xpose.msra.mxu0 0.0
    %665 = vmatprep.subr.mxu0 0.0
    %666 = vmatpush1.xpose.msra.mxu0 0.0
    %667 = vmatprep.subr.mxu0 0.0
    %668 = vmatpush1.xpose.msra.mxu0 0.0
    %669 = vmatprep.subr.mxu0 0.0
    %670 = vmatpush1.xpose.msra.mxu0 0.0
    %671 = vmatprep.subr.mxu0 0.0
    %672 = vmatpush1.xpose.msra.mxu0 0.0
    %673 = vmatprep.subr.mxu0 0.0
    %674 = vmatpush1.xpose.msra.mxu0 0.0
    %675 = vmatprep.subr.mxu0 0.0
    %676 = vmatpush1.xpose.msra.mxu0 0.0
    %677 = vmatprep.subr.mxu0 0.0
    %678 = vmatpush1.xpose.msra.mxu0 0.0
    %679 = vmatprep.subr.mxu0 0.0
    %680 = vmatpush1.xpose.msra.mxu0 0.0
    %681 = vmatprep.subr.mxu0 0.0
    %682 = vmatpush1.xpose.msra.mxu0 0.0
    %683 = vmatprep.subr.mxu0 0.0
    %684 = vmatpush1.xpose.msra.mxu0 0.0
    %685 = vmatprep.subr.mxu0 0.0
    %686 = vmatpush1.xpose.msra.mxu0 0.0
    %687 = vmatprep.subr.mxu0 0.0
    %688 = vmatpush1.xpose.msra.mxu0 0.0
    %689 = vmatprep.subr.mxu0 0.0
    %690 = vmatpush1.xpose.msra.mxu0 0.0
    %691 = vmatprep.subr.mxu0 0.0
    %692 = vmatpush1.xpose.msra.mxu0 0.0
    %693 = vmatprep.mubr.f32.mxu0 0.0
    %694 = vmatmul.mubr.f32.gmra.mrb[0].mxu0 %v625
    %v695 = vpop.f32.mrb[0].mxu0
    %v696 = vadd.f32 0.0, %v695
    %v697 = vpop.f32.mrb[0].mxu0
    %698 = vdwg.mxu0
    %699 = vrot.lane.b32.xlu0 %v165, 96
    %v700 = vpop.permute.xlu0 %699
    %v701 = vsel %vm168, %v165, 0
    %v703 = vsel %vm168, %v700, 0
    %705 = vmatprep.subr.mxu0 0.0
    %706 = vmatpush1.xpose.msra.mxu0 %v703
    %707 = vmatprep.subr.mxu0 0.0
    %708 = vmatpush1.xpose.msra.mxu0 0.0
    %709 = vmatprep.subr.mxu0 0.0
    %710 = vmatpush1.xpose.msra.mxu0 0.0
    %711 = vmatprep.subr.mxu0 0.0
    %712 = vmatpush1.xpose.msra.mxu0 0.0
    %713 = vmatprep.subr.mxu0 0.0
    %714 = vmatpush1.xpose.msra.mxu0 0.0
    %715 = vmatprep.subr.mxu0 0.0
    %716 = vmatpush1.xpose.msra.mxu0 0.0
    %717 = vmatprep.subr.mxu0 0.0
    %718 = vmatpush1.xpose.msra.mxu0 0.0
    %719 = vmatprep.subr.mxu0 0.0
    %720 = vmatpush1.xpose.msra.mxu0 0.0
    %721 = vmatprep.subr.mxu0 0.0
    %722 = vmatpush1.xpose.msra.mxu0 0.0
    %723 = vmatprep.subr.mxu0 0.0
    %724 = vmatpush1.xpose.msra.mxu0 0.0
    %725 = vmatprep.subr.mxu0 0.0
    %726 = vmatpush1.xpose.msra.mxu0 0.0
    %727 = vmatprep.subr.mxu0 0.0
    %728 = vmatpush1.xpose.msra.mxu0 0.0
    %729 = vmatprep.subr.mxu0 0.0
    %730 = vmatpush1.xpose.msra.mxu0 0.0
    %731 = vmatprep.subr.mxu0 0.0
    %732 = vmatpush1.xpose.msra.mxu0 0.0
    %733 = vmatprep.subr.mxu0 0.0
    %734 = vmatpush1.xpose.msra.mxu0 0.0
    %735 = vmatprep.subr.mxu0 0.0
    %736 = vmatpush1.xpose.msra.mxu0 0.0
    %737 = vmatprep.subr.mxu0 0.0
    %738 = vmatpush1.xpose.msra.mxu0 0.0
    %739 = vmatprep.subr.mxu0 0.0
    %740 = vmatpush1.xpose.msra.mxu0 0.0
    %741 = vmatprep.subr.mxu0 0.0
    %742 = vmatpush1.xpose.msra.mxu0 0.0
    %743 = vmatprep.subr.mxu0 0.0
    %744 = vmatpush1.xpose.msra.mxu0 0.0
    %745 = vmatprep.subr.mxu0 0.0
    %746 = vmatpush1.xpose.msra.mxu0 0.0
    %747 = vmatprep.subr.mxu0 0.0
    %748 = vmatpush1.xpose.msra.mxu0 0.0
    %749 = vmatprep.subr.mxu0 0.0
    %750 = vmatpush1.xpose.msra.mxu0 0.0
    %751 = vmatprep.subr.mxu0 0.0
    %752 = vmatpush1.xpose.msra.mxu0 0.0
    %753 = vmatprep.subr.mxu0 0.0
    %754 = vmatpush1.xpose.msra.mxu0 0.0
    %755 = vmatprep.subr.mxu0 0.0
    %756 = vmatpush1.xpose.msra.mxu0 0.0
    %757 = vmatprep.subr.mxu0 0.0
    %758 = vmatpush1.xpose.msra.mxu0 0.0
    %759 = vmatprep.subr.mxu0 0.0
    %760 = vmatpush1.xpose.msra.mxu0 0.0
    %761 = vmatprep.subr.mxu0 0.0
    %762 = vmatpush1.xpose.msra.mxu0 0.0
    %763 = vmatprep.subr.mxu0 0.0
    %764 = vmatpush1.xpose.msra.mxu0 0.0
    %765 = vmatprep.subr.mxu0 0.0
    %766 = vmatpush1.xpose.msra.mxu0 0.0
    %767 = vmatprep.subr.mxu0 0.0
    %768 = vmatpush1.xpose.msra.mxu0 0.0
    %769 = vmatprep.mubr.f32.mxu0 0.0
    %770 = vmatmul.mubr.f32.gmra.mrb[0].mxu0 %v701
    %v771 = vpop.f32.mrb[0].mxu0
    %v772 = vadd.f32 0.0, %v771
    %v773 = vpop.f32.mrb[0].mxu0
    %774 = vdwg.mxu0
    %v775 = vsel %vm168, %v240, -inf
    %776 = vmax.xlane.f32.xlu0 %v775
    %v777 = vpop.xlane.xlu0 %776
    %v778 = vsel %vm168, %v316, -inf
    %779 = vmax.xlane.f32.xlu0 %v778
    %v780 = vpop.xlane.xlu0 %779
    %v781 = vsel %vm168, %v392, -inf
    %782 = vmax.xlane.f32.xlu0 %v781
    %v783 = vpop.xlane.xlu0 %782
    %v784 = vsel %vm168, %v468, -inf
    %785 = vmax.xlane.f32.xlu0 %v784
    %v786 = vpop.xlane.xlu0 %785
    %v787 = vsel %vm168, %v544, -inf
    %788 = vmax.xlane.f32.xlu0 %v787
    %v789 = vpop.xlane.xlu0 %788
    %v790 = vsel %vm168, %v620, -inf
    %791 = vmax.xlane.f32.xlu0 %v790
    %v792 = vpop.xlane.xlu0 %791
    %v793 = vsel %vm168, %v696, -inf
    %794 = vmax.xlane.f32.xlu0 %v793
    %v795 = vpop.xlane.xlu0 %794
    %v796 = vsel %vm168, %v772, -inf
    %797 = vmax.xlane.f32.xlu0 %v796
    %v798 = vpop.xlane.xlu0 %797
    %v799 = vsub.f32 %v240, %v777
    %v800 = vsub.f32 %v316, %v780
    %v801 = vsub.f32 %v392, %v783
    %v802 = vsub.f32 %v468, %v786
    %v803 = vsub.f32 %v544, %v789
    %v804 = vsub.f32 %v620, %v792
    %v805 = vsub.f32 %v696, %v795
    %v806 = vsub.f32 %v772, %v798
    %v807 = vmul.f32 %v799, 1.442695
    %v808 = vpow.pop %v807
    %v809 = vmul.f32 %v800, 1.442695
    %v810 = vpow.pop %v809
    %v811 = vmul.f32 %v801, 1.442695
    %v812 = vpow.pop %v811
    %v813 = vmul.f32 %v802, 1.442695
    %v814 = vpow.pop %v813
    %v815 = vmul.f32 %v803, 1.442695
    %v816 = vpow.pop %v815
    %v817 = vmul.f32 %v804, 1.442695
    %v818 = vpow.pop %v817
    %v819 = vmul.f32 %v805, 1.442695
    %v820 = vpow.pop %v819
    %v821 = vmul.f32 %v806, 1.442695
    %v822 = vpow.pop %v821
    %v823 = vsel %vm168, %v808, 0.0
    %824 = vadd.xlane.f32.xlu0 %v823
    %v825 = vpop.xlane.xlu0 %824
    %v826 = vsel %vm168, %v810, 0.0
    %827 = vadd.xlane.f32.xlu0 %v826
    %v828 = vpop.xlane.xlu0 %827
    %v829 = vsel %vm168, %v812, 0.0
    %830 = vadd.xlane.f32.xlu0 %v829
    %v831 = vpop.xlane.xlu0 %830
    %v832 = vsel %vm168, %v814, 0.0
    %833 = vadd.xlane.f32.xlu0 %v832
    %v834 = vpop.xlane.xlu0 %833
    %v835 = vsel %vm168, %v816, 0.0
    %836 = vadd.xlane.f32.xlu0 %v835
    %v837 = vpop.xlane.xlu0 %836
    %v838 = vsel %vm168, %v818, 0.0
    %839 = vadd.xlane.f32.xlu0 %v838
    %v840 = vpop.xlane.xlu0 %839
    %v841 = vsel %vm168, %v820, 0.0
    %842 = vadd.xlane.f32.xlu0 %v841
    %v843 = vpop.xlane.xlu0 %842
    %v844 = vsel %vm168, %v822, 0.0
    %845 = vadd.xlane.f32.xlu0 %v844
    %v846 = vpop.xlane.xlu0 %845
    %v847 = vrcp.pop %v825
    %v848 = vrcp.pop %v828
    %v849 = vrcp.pop %v831
    %v850 = vrcp.pop %v834
    %v851 = vrcp.pop %v837
    %v852 = vrcp.pop %v840
    %v853 = vrcp.pop %v843
    %v854 = vrcp.pop %v846
    %v855 = vmul.f32 %v808, %v847
    %v856 = vmul.f32 %v810, %v848
    %v857 = vmul.f32 %v812, %v849
    %v858 = vmul.f32 %v814, %v850
    %v859 = vmul.f32 %v816, %v851
    %v860 = vmul.f32 %v818, %v852
    %v861 = vmul.f32 %v820, %v853
    %v862 = vmul.f32 %v822, %v854
    %863 = vrot.lane.b32.xlu0 %v144, 64
    %v864 = vpop.permute.xlu0 %863
    %v867 = vsel %vm168, %v855, 0
    %869 = vmatprep.subr.mxu0 0.0
    %870 = vmatpush1.msra.mxu0 %v864
    %871 = vmatprep.subr.mxu0 0.0
    %872 = vmatpush1.msra.mxu0 0.0
    %873 = vmatprep.subr.mxu0 0.0
    %874 = vmatpush1.msra.mxu0 0.0
    %875 = vmatprep.subr.mxu0 0.0
    %876 = vmatpush1.msra.mxu0 0.0
    %877 = vmatprep.subr.mxu0 0.0
    %878 = vmatpush1.msra.mxu0 0.0
    %879 = vmatprep.subr.mxu0 0.0
    %880 = vmatpush1.msra.mxu0 0.0
    %881 = vmatprep.subr.mxu0 0.0
    %882 = vmatpush1.msra.mxu0 0.0
    %883 = vmatprep.subr.mxu0 0.0
    %884 = vmatpush1.msra.mxu0 0.0
    %885 = vmatprep.subr.mxu0 0.0
    %886 = vmatpush1.msra.mxu0 0.0
    %887 = vmatprep.subr.mxu0 0.0
    %888 = vmatpush1.msra.mxu0 0.0
    %889 = vmatprep.subr.mxu0 0.0
    %890 = vmatpush1.msra.mxu0 0.0
    %891 = vmatprep.subr.mxu0 0.0
    %892 = vmatpush1.msra.mxu0 0.0
    %893 = vmatprep.subr.mxu0 0.0
    %894 = vmatpush1.msra.mxu0 0.0
    %895 = vmatprep.subr.mxu0 0.0
    %896 = vmatpush1.msra.mxu0 0.0
    %897 = vmatprep.subr.mxu0 0.0
    %898 = vmatpush1.msra.mxu0 0.0
    %899 = vmatprep.subr.mxu0 0.0
    %900 = vmatpush1.msra.mxu0 0.0
    %901 = vmatprep.subr.mxu0 0.0
    %902 = vmatpush1.msra.mxu0 0.0
    %903 = vmatprep.subr.mxu0 0.0
    %904 = vmatpush1.msra.mxu0 0.0
    %905 = vmatprep.subr.mxu0 0.0
    %906 = vmatpush1.msra.mxu0 0.0
    %907 = vmatprep.subr.mxu0 0.0
    %908 = vmatpush1.msra.mxu0 0.0
    %909 = vmatprep.subr.mxu0 0.0
    %910 = vmatpush1.msra.mxu0 0.0
    %911 = vmatprep.subr.mxu0 0.0
    %912 = vmatpush1.msra.mxu0 0.0
    %913 = vmatprep.subr.mxu0 0.0
    %914 = vmatpush1.msra.mxu0 0.0
    %915 = vmatprep.subr.mxu0 0.0
    %916 = vmatpush1.msra.mxu0 0.0
    %917 = vmatprep.subr.mxu0 0.0
    %918 = vmatpush1.msra.mxu0 0.0
    %919 = vmatprep.subr.mxu0 0.0
    %920 = vmatpush1.msra.mxu0 0.0
    %921 = vmatprep.subr.mxu0 0.0
    %922 = vmatpush1.msra.mxu0 0.0
    %923 = vmatprep.subr.mxu0 0.0
    %924 = vmatpush1.msra.mxu0 0.0
    %925 = vmatprep.subr.mxu0 0.0
    %926 = vmatpush1.msra.mxu0 0.0
    %927 = vmatprep.subr.mxu0 0.0
    %928 = vmatpush1.msra.mxu0 0.0
    %929 = vmatprep.subr.mxu0 0.0
    %930 = vmatpush1.msra.mxu0 0.0
    %931 = vmatprep.subr.mxu0 0.0
    %932 = vmatpush1.msra.mxu0 0.0
    %933 = vmatprep.mubr.f32.mxu0 0.0
    %934 = vmatmul.mubr.f32.gmra.mrb[0].mxu0 %v867
    %v935 = vpop.f32.mrb[0].mxu0
    %v936 = vadd.f32 0.0, %v935
    %v937 = vpop.f32.mrb[0].mxu0
    %938 = vdwg.mxu0
    %939 = vrot.lane.b32.xlu0 %v149, 64
    %v940 = vpop.permute.xlu0 %939
    %v943 = vsel %vm168, %v856, 0
    %945 = vmatprep.subr.mxu0 0.0
    %946 = vmatpush1.msra.mxu0 %v940
    %947 = vmatprep.subr.mxu0 0.0
    %948 = vmatpush1.msra.mxu0 0.0
    %949 = vmatprep.subr.mxu0 0.0
    %950 = vmatpush1.msra.mxu0 0.0
    %951 = vmatprep.subr.mxu0 0.0
    %952 = vmatpush1.msra.mxu0 0.0
    %953 = vmatprep.subr.mxu0 0.0
    %954 = vmatpush1.msra.mxu0 0.0
    %955 = vmatprep.subr.mxu0 0.0
    %956 = vmatpush1.msra.mxu0 0.0
    %957 = vmatprep.subr.mxu0 0.0
    %958 = vmatpush1.msra.mxu0 0.0
    %959 = vmatprep.subr.mxu0 0.0
    %960 = vmatpush1.msra.mxu0 0.0
    %961 = vmatprep.subr.mxu0 0.0
    %962 = vmatpush1.msra.mxu0 0.0
    %963 = vmatprep.subr.mxu0 0.0
    %964 = vmatpush1.msra.mxu0 0.0
    %965 = vmatprep.subr.mxu0 0.0
    %966 = vmatpush1.msra.mxu0 0.0
    %967 = vmatprep.subr.mxu0 0.0
    %968 = vmatpush1.msra.mxu0 0.0
    %969 = vmatprep.subr.mxu0 0.0
    %970 = vmatpush1.msra.mxu0 0.0
    %971 = vmatprep.subr.mxu0 0.0
    %972 = vmatpush1.msra.mxu0 0.0
    %973 = vmatprep.subr.mxu0 0.0
    %974 = vmatpush1.msra.mxu0 0.0
    %975 = vmatprep.subr.mxu0 0.0
    %976 = vmatpush1.msra.mxu0 0.0
    %977 = vmatprep.subr.mxu0 0.0
    %978 = vmatpush1.msra.mxu0 0.0
    %979 = vmatprep.subr.mxu0 0.0
    %980 = vmatpush1.msra.mxu0 0.0
    %981 = vmatprep.subr.mxu0 0.0
    %982 = vmatpush1.msra.mxu0 0.0
    %983 = vmatprep.subr.mxu0 0.0
    %984 = vmatpush1.msra.mxu0 0.0
    %985 = vmatprep.subr.mxu0 0.0
    %986 = vmatpush1.msra.mxu0 0.0
    %987 = vmatprep.subr.mxu0 0.0
    %988 = vmatpush1.msra.mxu0 0.0
    %989 = vmatprep.subr.mxu0 0.0
    %990 = vmatpush1.msra.mxu0 0.0
    %991 = vmatprep.subr.mxu0 0.0
    %992 = vmatpush1.msra.mxu0 0.0
    %993 = vmatprep.subr.mxu0 0.0
    %994 = vmatpush1.msra.mxu0 0.0
    %995 = vmatprep.subr.mxu0 0.0
    %996 = vmatpush1.msra.mxu0 0.0
    %997 = vmatprep.subr.mxu0 0.0
    %998 = vmatpush1.msra.mxu0 0.0
    %999 = vmatprep.subr.mxu0 0.0
    %1000 = vmatpush1.msra.mxu0 0.0
    %1001 = vmatprep.subr.mxu0 0.0
    %1002 = vmatpush1.msra.mxu0 0.0
    %1003 = vmatprep.subr.mxu0 0.0
    %1004 = vmatpush1.msra.mxu0 0.0
    %1005 = vmatprep.subr.mxu0 0.0
    %1006 = vmatpush1.msra.mxu0 0.0
    %1007 = vmatprep.subr.mxu0 0.0
    %1008 = vmatpush1.msra.mxu0 0.0
    %1009 = vmatprep.mubr.f32.mxu0 0.0
    %1010 = vmatmul.mubr.f32.gmra.mrb[0].mxu0 %v943
    %v1011 = vpop.f32.mrb[0].mxu0
    %v1012 = vadd.f32 0.0, %v1011
    %v1013 = vpop.f32.mrb[0].mxu0
    %1014 = vdwg.mxu0
    %1015 = vrot.lane.b32.xlu0 %v155, 64
    %v1016 = vpop.permute.xlu0 %1015
    %v1019 = vsel %vm168, %v857, 0
    %1021 = vmatprep.subr.mxu0 0.0
    %1022 = vmatpush1.msra.mxu0 %v1016
    %1023 = vmatprep.subr.mxu0 0.0
    %1024 = vmatpush1.msra.mxu0 0.0
    %1025 = vmatprep.subr.mxu0 0.0
    %1026 = vmatpush1.msra.mxu0 0.0
    %1027 = vmatprep.subr.mxu0 0.0
    %1028 = vmatpush1.msra.mxu0 0.0
    %1029 = vmatprep.subr.mxu0 0.0
    %1030 = vmatpush1.msra.mxu0 0.0
    %1031 = vmatprep.subr.mxu0 0.0
    %1032 = vmatpush1.msra.mxu0 0.0
    %1033 = vmatprep.subr.mxu0 0.0
    %1034 = vmatpush1.msra.mxu0 0.0
    %1035 = vmatprep.subr.mxu0 0.0
    %1036 = vmatpush1.msra.mxu0 0.0
    %1037 = vmatprep.subr.mxu0 0.0
    %1038 = vmatpush1.msra.mxu0 0.0
    %1039 = vmatprep.subr.mxu0 0.0
    %1040 = vmatpush1.msra.mxu0 0.0
    %1041 = vmatprep.subr.mxu0 0.0
    %1042 = vmatpush1.msra.mxu0 0.0
    %1043 = vmatprep.subr.mxu0 0.0
    %1044 = vmatpush1.msra.mxu0 0.0
    %1045 = vmatprep.subr.mxu0 0.0
    %1046 = vmatpush1.msra.mxu0 0.0
    %1047 = vmatprep.subr.mxu0 0.0
    %1048 = vmatpush1.msra.mxu0 0.0
    %1049 = vmatprep.subr.mxu0 0.0
    %1050 = vmatpush1.msra.mxu0 0.0
    %1051 = vmatprep.subr.mxu0 0.0
    %1052 = vmatpush1.msra.mxu0 0.0
    %1053 = vmatprep.subr.mxu0 0.0
    %1054 = vmatpush1.msra.mxu0 0.0
    %1055 = vmatprep.subr.mxu0 0.0
    %1056 = vmatpush1.msra.mxu0 0.0
    %1057 = vmatprep.subr.mxu0 0.0
    %1058 = vmatpush1.msra.mxu0 0.0
    %1059 = vmatprep.subr.mxu0 0.0
    %1060 = vmatpush1.msra.mxu0 0.0
    %1061 = vmatprep.subr.mxu0 0.0
    %1062 = vmatpush1.msra.mxu0 0.0
    %1063 = vmatprep.subr.mxu0 0.0
    %1064 = vmatpush1.msra.mxu0 0.0
    %1065 = vmatprep.subr.mxu0 0.0
    %1066 = vmatpush1.msra.mxu0 0.0
    %1067 = vmatprep.subr.mxu0 0.0
    %1068 = vmatpush1.msra.mxu0 0.0
    %1069 = vmatprep.subr.mxu0 0.0
    %1070 = vmatpush1.msra.mxu0 0.0
    %1071 = vmatprep.subr.mxu0 0.0
    %1072 = vmatpush1.msra.mxu0 0.0
    %1073 = vmatprep.subr.mxu0 0.0
    %1074 = vmatpush1.msra.mxu0 0.0
    %1075 = vmatprep.subr.mxu0 0.0
    %1076 = vmatpush1.msra.mxu0 0.0
    %1077 = vmatprep.subr.mxu0 0.0
    %1078 = vmatpush1.msra.mxu0 0.0
    %1079 = vmatprep.subr.mxu0 0.0
    %1080 = vmatpush1.msra.mxu0 0.0
    %1081 = vmatprep.subr.mxu0 0.0
    %1082 = vmatpush1.msra.mxu0 0.0
    %1083 = vmatprep.subr.mxu0 0.0
    %1084 = vmatpush1.msra.mxu0 0.0
    %1085 = vmatprep.mubr.f32.mxu0 0.0
    %1086 = vmatmul.mubr.f32.gmra.mrb[0].mxu0 %v1019
    %v1087 = vpop.f32.mrb[0].mxu0
    %v1088 = vadd.f32 0.0, %v1087
    %v1089 = vpop.f32.mrb[0].mxu0
    %1090 = vdwg.mxu0
    %1091 = vrot.lane.b32.xlu0 %v157, 64
    %v1092 = vpop.permute.xlu0 %1091
    %v1095 = vsel %vm168, %v858, 0
    %1097 = vmatprep.subr.mxu0 0.0
    %1098 = vmatpush1.msra.mxu0 %v1092
    %1099 = vmatprep.subr.mxu0 0.0
    %1100 = vmatpush1.msra.mxu0 0.0
    %1101 = vmatprep.subr.mxu0 0.0
    %1102 = vmatpush1.msra.mxu0 0.0
    %1103 = vmatprep.subr.mxu0 0.0
    %1104 = vmatpush1.msra.mxu0 0.0
    %1105 = vmatprep.subr.mxu0 0.0
    %1106 = vmatpush1.msra.mxu0 0.0
    %1107 = vmatprep.subr.mxu0 0.0
    %1108 = vmatpush1.msra.mxu0 0.0
    %1109 = vmatprep.subr.mxu0 0.0
    %1110 = vmatpush1.msra.mxu0 0.0
    %1111 = vmatprep.subr.mxu0 0.0
    %1112 = vmatpush1.msra.mxu0 0.0
    %1113 = vmatprep.subr.mxu0 0.0
    %1114 = vmatpush1.msra.mxu0 0.0
    %1115 = vmatprep.subr.mxu0 0.0
    %1116 = vmatpush1.msra.mxu0 0.0
    %1117 = vmatprep.subr.mxu0 0.0
    %1118 = vmatpush1.msra.mxu0 0.0
    %1119 = vmatprep.subr.mxu0 0.0
    %1120 = vmatpush1.msra.mxu0 0.0
    %1121 = vmatprep.subr.mxu0 0.0
    %1122 = vmatpush1.msra.mxu0 0.0
    %1123 = vmatprep.subr.mxu0 0.0
    %1124 = vmatpush1.msra.mxu0 0.0
    %1125 = vmatprep.subr.mxu0 0.0
    %1126 = vmatpush1.msra.mxu0 0.0
    %1127 = vmatprep.subr.mxu0 0.0
    %1128 = vmatpush1.msra.mxu0 0.0
    %1129 = vmatprep.subr.mxu0 0.0
    %1130 = vmatpush1.msra.mxu0 0.0
    %1131 = vmatprep.subr.mxu0 0.0
    %1132 = vmatpush1.msra.mxu0 0.0
    %1133 = vmatprep.subr.mxu0 0.0
    %1134 = vmatpush1.msra.mxu0 0.0
    %1135 = vmatprep.subr.mxu0 0.0
    %1136 = vmatpush1.msra.mxu0 0.0
    %1137 = vmatprep.subr.mxu0 0.0
    %1138 = vmatpush1.msra.mxu0 0.0
    %1139 = vmatprep.subr.mxu0 0.0
    %1140 = vmatpush1.msra.mxu0 0.0
    %1141 = vmatprep.subr.mxu0 0.0
    %1142 = vmatpush1.msra.mxu0 0.0
    %1143 = vmatprep.subr.mxu0 0.0
    %1144 = vmatpush1.msra.mxu0 0.0
    %1145 = vmatprep.subr.mxu0 0.0
    %1146 = vmatpush1.msra.mxu0 0.0
    %1147 = vmatprep.subr.mxu0 0.0
    %1148 = vmatpush1.msra.mxu0 0.0
    %1149 = vmatprep.subr.mxu0 0.0
    %1150 = vmatpush1.msra.mxu0 0.0
    %1151 = vmatprep.subr.mxu0 0.0
    %1152 = vmatpush1.msra.mxu0 0.0
    %1153 = vmatprep.subr.mxu0 0.0
    %1154 = vmatpush1.msra.mxu0 0.0
    %1155 = vmatprep.subr.mxu0 0.0
    %1156 = vmatpush1.msra.mxu0 0.0
    %1157 = vmatprep.subr.mxu0 0.0
    %1158 = vmatpush1.msra.mxu0 0.0
    %1159 = vmatprep.subr.mxu0 0.0
    %1160 = vmatpush1.msra.mxu0 0.0
    %1161 = vmatprep.mubr.f32.mxu0 0.0
    %1162 = vmatmul.mubr.f32.gmra.mrb[0].mxu0 %v1095
    %v1163 = vpop.f32.mrb[0].mxu0
    %v1164 = vadd.f32 0.0, %v1163
    %v1165 = vpop.f32.mrb[0].mxu0
    %1166 = vdwg.mxu0
    %1167 = vrot.lane.b32.xlu0 %v159, 64
    %v1168 = vpop.permute.xlu0 %1167
    %v1171 = vsel %vm168, %v859, 0
    %1173 = vmatprep.subr.mxu0 0.0
    %1174 = vmatpush1.msra.mxu0 %v1168
    %1175 = vmatprep.subr.mxu0 0.0
    %1176 = vmatpush1.msra.mxu0 0.0
    %1177 = vmatprep.subr.mxu0 0.0
    %1178 = vmatpush1.msra.mxu0 0.0
    %1179 = vmatprep.subr.mxu0 0.0
    %1180 = vmatpush1.msra.mxu0 0.0
    %1181 = vmatprep.subr.mxu0 0.0
    %1182 = vmatpush1.msra.mxu0 0.0
    %1183 = vmatprep.subr.mxu0 0.0
    %1184 = vmatpush1.msra.mxu0 0.0
    %1185 = vmatprep.subr.mxu0 0.0
    %1186 = vmatpush1.msra.mxu0 0.0
    %1187 = vmatprep.subr.mxu0 0.0
    %1188 = vmatpush1.msra.mxu0 0.0
    %1189 = vmatprep.subr.mxu0 0.0
    %1190 = vmatpush1.msra.mxu0 0.0
    %1191 = vmatprep.subr.mxu0 0.0
    %1192 = vmatpush1.msra.mxu0 0.0
    %1193 = vmatprep.subr.mxu0 0.0
    %1194 = vmatpush1.msra.mxu0 0.0
    %1195 = vmatprep.subr.mxu0 0.0
    %1196 = vmatpush1.msra.mxu0 0.0
    %1197 = vmatprep.subr.mxu0 0.0
    %1198 = vmatpush1.msra.mxu0 0.0
    %1199 = vmatprep.subr.mxu0 0.0
    %1200 = vmatpush1.msra.mxu0 0.0
    %1201 = vmatprep.subr.mxu0 0.0
    %1202 = vmatpush1.msra.mxu0 0.0
    %1203 = vmatprep.subr.mxu0 0.0
    %1204 = vmatpush1.msra.mxu0 0.0
    %1205 = vmatprep.subr.mxu0 0.0
    %1206 = vmatpush1.msra.mxu0 0.0
    %1207 = vmatprep.subr.mxu0 0.0
    %1208 = vmatpush1.msra.mxu0 0.0
    %1209 = vmatprep.subr.mxu0 0.0
    %1210 = vmatpush1.msra.mxu0 0.0
    %1211 = vmatprep.subr.mxu0 0.0
    %1212 = vmatpush1.msra.mxu0 0.0
    %1213 = vmatprep.subr.mxu0 0.0
    %1214 = vmatpush1.msra.mxu0 0.0
    %1215 = vmatprep.subr.mxu0 0.0
    %1216 = vmatpush1.msra.mxu0 0.0
    %1217 = vmatprep.subr.mxu0 0.0
    %1218 = vmatpush1.msra.mxu0 0.0
    %1219 = vmatprep.subr.mxu0 0.0
    %1220 = vmatpush1.msra.mxu0 0.0
    %1221 = vmatprep.subr.mxu0 0.0
    %1222 = vmatpush1.msra.mxu0 0.0
    %1223 = vmatprep.subr.mxu0 0.0
    %1224 = vmatpush1.msra.mxu0 0.0
    %1225 = vmatprep.subr.mxu0 0.0
    %1226 = vmatpush1.msra.mxu0 0.0
    %1227 = vmatprep.subr.mxu0 0.0
    %1228 = vmatpush1.msra.mxu0 0.0
    %1229 = vmatprep.subr.mxu0 0.0
    %1230 = vmatpush1.msra.mxu0 0.0
    %1231 = vmatprep.subr.mxu0 0.0
    %1232 = vmatpush1.msra.mxu0 0.0
    %1233 = vmatprep.subr.mxu0 0.0
    %1234 = vmatpush1.msra.mxu0 0.0
    %1235 = vmatprep.subr.mxu0 0.0
    %1236 = vmatpush1.msra.mxu0 0.0
    %1237 = vmatprep.mubr.f32.mxu0 0.0
    %1238 = vmatmul.mubr.f32.gmra.mrb[0].mxu0 %v1171
    %v1239 = vpop.f32.mrb[0].mxu0
    %v1240 = vadd.f32 0.0, %v1239
    %v1241 = vpop.f32.mrb[0].mxu0
    %1242 = vdwg.mxu0
    %1243 = vrot.lane.b32.xlu0 %v161, 64
    %v1244 = vpop.permute.xlu0 %1243
    %v1247 = vsel %vm168, %v860, 0
    %1249 = vmatprep.subr.mxu0 0.0
    %1250 = vmatpush1.msra.mxu0 %v1244
    %1251 = vmatprep.subr.mxu0 0.0
    %1252 = vmatpush1.msra.mxu0 0.0
    %1253 = vmatprep.subr.mxu0 0.0
    %1254 = vmatpush1.msra.mxu0 0.0
    %1255 = vmatprep.subr.mxu0 0.0
    %1256 = vmatpush1.msra.mxu0 0.0
    %1257 = vmatprep.subr.mxu0 0.0
    %1258 = vmatpush1.msra.mxu0 0.0
    %1259 = vmatprep.subr.mxu0 0.0
    %1260 = vmatpush1.msra.mxu0 0.0
    %1261 = vmatprep.subr.mxu0 0.0
    %1262 = vmatpush1.msra.mxu0 0.0
    %1263 = vmatprep.subr.mxu0 0.0
    %1264 = vmatpush1.msra.mxu0 0.0
    %1265 = vmatprep.subr.mxu0 0.0
    %1266 = vmatpush1.msra.mxu0 0.0
    %1267 = vmatprep.subr.mxu0 0.0
    %1268 = vmatpush1.msra.mxu0 0.0
    %1269 = vmatprep.subr.mxu0 0.0
    %1270 = vmatpush1.msra.mxu0 0.0
    %1271 = vmatprep.subr.mxu0 0.0
    %1272 = vmatpush1.msra.mxu0 0.0
    %1273 = vmatprep.subr.mxu0 0.0
    %1274 = vmatpush1.msra.mxu0 0.0
    %1275 = vmatprep.subr.mxu0 0.0
    %1276 = vmatpush1.msra.mxu0 0.0
    %1277 = vmatprep.subr.mxu0 0.0
    %1278 = vmatpush1.msra.mxu0 0.0
    %1279 = vmatprep.subr.mxu0 0.0
    %1280 = vmatpush1.msra.mxu0 0.0
    %1281 = vmatprep.subr.mxu0 0.0
    %1282 = vmatpush1.msra.mxu0 0.0
    %1283 = vmatprep.subr.mxu0 0.0
    %1284 = vmatpush1.msra.mxu0 0.0
    %1285 = vmatprep.subr.mxu0 0.0
    %1286 = vmatpush1.msra.mxu0 0.0
    %1287 = vmatprep.subr.mxu0 0.0
    %1288 = vmatpush1.msra.mxu0 0.0
    %1289 = vmatprep.subr.mxu0 0.0
    %1290 = vmatpush1.msra.mxu0 0.0
    %1291 = vmatprep.subr.mxu0 0.0
    %1292 = vmatpush1.msra.mxu0 0.0
    %1293 = vmatprep.subr.mxu0 0.0
    %1294 = vmatpush1.msra.mxu0 0.0
    %1295 = vmatprep.subr.mxu0 0.0
    %1296 = vmatpush1.msra.mxu0 0.0
    %1297 = vmatprep.subr.mxu0 0.0
    %1298 = vmatpush1.msra.mxu0 0.0
    %1299 = vmatprep.subr.mxu0 0.0
    %1300 = vmatpush1.msra.mxu0 0.0
    %1301 = vmatprep.subr.mxu0 0.0
    %1302 = vmatpush1.msra.mxu0 0.0
    %1303 = vmatprep.subr.mxu0 0.0
    %1304 = vmatpush1.msra.mxu0 0.0
    %1305 = vmatprep.subr.mxu0 0.0
    %1306 = vmatpush1.msra.mxu0 0.0
    %1307 = vmatprep.subr.mxu0 0.0
    %1308 = vmatpush1.msra.mxu0 0.0
    %1309 = vmatprep.subr.mxu0 0.0
    %1310 = vmatpush1.msra.mxu0 0.0
    %1311 = vmatprep.subr.mxu0 0.0
    %1312 = vmatpush1.msra.mxu0 0.0
    %1313 = vmatprep.mubr.f32.mxu0 0.0
    %1314 = vmatmul.mubr.f32.gmra.mrb[0].mxu0 %v1247
    %v1315 = vpop.f32.mrb[0].mxu0
    %v1316 = vadd.f32 0.0, %v1315
    %v1317 = vpop.f32.mrb[0].mxu0
    %1318 = vdwg.mxu0
    %1319 = vrot.lane.b32.xlu0 %v163, 64
    %v1320 = vpop.permute.xlu0 %1319
    %v1323 = vsel %vm168, %v861, 0
    %1325 = vmatprep.subr.mxu0 0.0
    %1326 = vmatpush1.msra.mxu0 %v1320
    %1327 = vmatprep.subr.mxu0 0.0
    %1328 = vmatpush1.msra.mxu0 0.0
    %1329 = vmatprep.subr.mxu0 0.0
    %1330 = vmatpush1.msra.mxu0 0.0
    %1331 = vmatprep.subr.mxu0 0.0
    %1332 = vmatpush1.msra.mxu0 0.0
    %1333 = vmatprep.subr.mxu0 0.0
    %1334 = vmatpush1.msra.mxu0 0.0
    %1335 = vmatprep.subr.mxu0 0.0
    %1336 = vmatpush1.msra.mxu0 0.0
    %1337 = vmatprep.subr.mxu0 0.0
    %1338 = vmatpush1.msra.mxu0 0.0
    %1339 = vmatprep.subr.mxu0 0.0
    %1340 = vmatpush1.msra.mxu0 0.0
    %1341 = vmatprep.subr.mxu0 0.0
    %1342 = vmatpush1.msra.mxu0 0.0
    %1343 = vmatprep.subr.mxu0 0.0
    %1344 = vmatpush1.msra.mxu0 0.0
    %1345 = vmatprep.subr.mxu0 0.0
    %1346 = vmatpush1.msra.mxu0 0.0
    %1347 = vmatprep.subr.mxu0 0.0
    %1348 = vmatpush1.msra.mxu0 0.0
    %1349 = vmatprep.subr.mxu0 0.0
    %1350 = vmatpush1.msra.mxu0 0.0
    %1351 = vmatprep.subr.mxu0 0.0
    %1352 = vmatpush1.msra.mxu0 0.0
    %1353 = vmatprep.subr.mxu0 0.0
    %1354 = vmatpush1.msra.mxu0 0.0
    %1355 = vmatprep.subr.mxu0 0.0
    %1356 = vmatpush1.msra.mxu0 0.0
    %1357 = vmatprep.subr.mxu0 0.0
    %1358 = vmatpush1.msra.mxu0 0.0
    %1359 = vmatprep.subr.mxu0 0.0
    %1360 = vmatpush1.msra.mxu0 0.0
    %1361 = vmatprep.subr.mxu0 0.0
    %1362 = vmatpush1.msra.mxu0 0.0
    %1363 = vmatprep.subr.mxu0 0.0
    %1364 = vmatpush1.msra.mxu0 0.0
    %1365 = vmatprep.subr.mxu0 0.0
    %1366 = vmatpush1.msra.mxu0 0.0
    %1367 = vmatprep.subr.mxu0 0.0
    %1368 = vmatpush1.msra.mxu0 0.0
    %1369 = vmatprep.subr.mxu0 0.0
    %1370 = vmatpush1.msra.mxu0 0.0
    %1371 = vmatprep.subr.mxu0 0.0
    %1372 = vmatpush1.msra.mxu0 0.0
    %1373 = vmatprep.subr.mxu0 0.0
    %1374 = vmatpush1.msra.mxu0 0.0
    %1375 = vmatprep.subr.mxu0 0.0
    %1376 = vmatpush1.msra.mxu0 0.0
    %1377 = vmatprep.subr.mxu0 0.0
    %1378 = vmatpush1.msra.mxu0 0.0
    %1379 = vmatprep.subr.mxu0 0.0
    %1380 = vmatpush1.msra.mxu0 0.0
    %1381 = vmatprep.subr.mxu0 0.0
    %1382 = vmatpush1.msra.mxu0 0.0
    %1383 = vmatprep.subr.mxu0 0.0
    %1384 = vmatpush1.msra.mxu0 0.0
    %1385 = vmatprep.subr.mxu0 0.0
    %1386 = vmatpush1.msra.mxu0 0.0
    %1387 = vmatprep.subr.mxu0 0.0
    %1388 = vmatpush1.msra.mxu0 0.0
    %1389 = vmatprep.mubr.f32.mxu0 0.0
    %1390 = vmatmul.mubr.f32.gmra.mrb[0].mxu0 %v1323
    %v1391 = vpop.f32.mrb[0].mxu0
    %v1392 = vadd.f32 0.0, %v1391
    %v1393 = vpop.f32.mrb[0].mxu0
    %1394 = vdwg.mxu0
    %1395 = vrot.lane.b32.xlu0 %v165, 64
    %v1396 = vpop.permute.xlu0 %1395
    %v1399 = vsel %vm168, %v862, 0
    %1401 = vmatprep.subr.mxu0 0.0
    %1402 = vmatpush1.msra.mxu0 %v1396
    %1403 = vmatprep.subr.mxu0 0.0
    %1404 = vmatpush1.msra.mxu0 0.0
    %1405 = vmatprep.subr.mxu0 0.0
    %1406 = vmatpush1.msra.mxu0 0.0
    %1407 = vmatprep.subr.mxu0 0.0
    %1408 = vmatpush1.msra.mxu0 0.0
    %1409 = vmatprep.subr.mxu0 0.0
    %1410 = vmatpush1.msra.mxu0 0.0
    %1411 = vmatprep.subr.mxu0 0.0
    %1412 = vmatpush1.msra.mxu0 0.0
    %1413 = vmatprep.subr.mxu0 0.0
    %1414 = vmatpush1.msra.mxu0 0.0
    %1415 = vmatprep.subr.mxu0 0.0
    %1416 = vmatpush1.msra.mxu0 0.0
    %1417 = vmatprep.subr.mxu0 0.0
    %1418 = vmatpush1.msra.mxu0 0.0
    %1419 = vmatprep.subr.mxu0 0.0
    %1420 = vmatpush1.msra.mxu0 0.0
    %1421 = vmatprep.subr.mxu0 0.0
    %1422 = vmatpush1.msra.mxu0 0.0
    %1423 = vmatprep.subr.mxu0 0.0
    %1424 = vmatpush1.msra.mxu0 0.0
    %1425 = vmatprep.subr.mxu0 0.0
    %1426 = vmatpush1.msra.mxu0 0.0
    %1427 = vmatprep.subr.mxu0 0.0
    %1428 = vmatpush1.msra.mxu0 0.0
    %1429 = vmatprep.subr.mxu0 0.0
    %1430 = vmatpush1.msra.mxu0 0.0
    %1431 = vmatprep.subr.mxu0 0.0
    %1432 = vmatpush1.msra.mxu0 0.0
    %1433 = vmatprep.subr.mxu0 0.0
    %1434 = vmatpush1.msra.mxu0 0.0
    %1435 = vmatprep.subr.mxu0 0.0
    %1436 = vmatpush1.msra.mxu0 0.0
    %1437 = vmatprep.subr.mxu0 0.0
    %1438 = vmatpush1.msra.mxu0 0.0
    %1439 = vmatprep.subr.mxu0 0.0
    %1440 = vmatpush1.msra.mxu0 0.0
    %1441 = vmatprep.subr.mxu0 0.0
    %1442 = vmatpush1.msra.mxu0 0.0
    %1443 = vmatprep.subr.mxu0 0.0
    %1444 = vmatpush1.msra.mxu0 0.0
    %1445 = vmatprep.subr.mxu0 0.0
    %1446 = vmatpush1.msra.mxu0 0.0
    %1447 = vmatprep.subr.mxu0 0.0
    %1448 = vmatpush1.msra.mxu0 0.0
    %1449 = vmatprep.subr.mxu0 0.0
    %1450 = vmatpush1.msra.mxu0 0.0
    %1451 = vmatprep.subr.mxu0 0.0
    %1452 = vmatpush1.msra.mxu0 0.0
    %1453 = vmatprep.subr.mxu0 0.0
    %1454 = vmatpush1.msra.mxu0 0.0
    %1455 = vmatprep.subr.mxu0 0.0
    %1456 = vmatpush1.msra.mxu0 0.0
    %1457 = vmatprep.subr.mxu0 0.0
    %1458 = vmatpush1.msra.mxu0 0.0
    %1459 = vmatprep.subr.mxu0 0.0
    %1460 = vmatpush1.msra.mxu0 0.0
    %1461 = vmatprep.subr.mxu0 0.0
    %1462 = vmatpush1.msra.mxu0 0.0
    %1463 = vmatprep.subr.mxu0 0.0
    %1464 = vmatpush1.msra.mxu0 0.0
    %1465 = vmatprep.mubr.f32.mxu0 0.0
    %1466 = vmatmul.mubr.f32.gmra.mrb[0].mxu0 %v1399
    %v1467 = vpop.f32.mrb[0].mxu0
    %v1468 = vadd.f32 0.0, %v1467
    %v1469 = vpop.f32.mrb[0].mxu0
    %1470 = vdwg.mxu0
    %1473 = vrot.lane.b32.xlu0 %v1088, 8
    %v1474 = vpop.permute.xlu0 %1473
    %1475 = vrot.lane.b32.xlu0 %v1164, 8
    %v1476 = vpop.permute.xlu0 %1475
    %1481 = vrot.lane.b32.xlu0 %v1240, 16
    %v1482 = vpop.permute.xlu0 %1481
    %1483 = vrot.lane.b32.xlu0 %v1316, 16
    %v1484 = vpop.permute.xlu0 %1483
    %1489 = vrot.lane.b32.xlu0 %v1392, 24
    %v1490 = vpop.permute.xlu0 %1489
    %1491 = vrot.lane.b32.xlu0 %v1468, 24
    %v1492 = vpop.permute.xlu0 %1491
    %v1495 = vsel %vm168, %v936, %v1474
    %v1496 = vsel %vm168, %v1012, %v1476
    %vm1497 = vcmask 130048
    %v1498 = vsel %vm1497, %v1495, %v1482
    %v1499 = vsel %vm1497, %v1496, %v1484
    %vm1500 = vcmask 195584
    %v1501 = vsel %vm1500, %v1498, %v1490
    %v1502 = vsel %vm1500, %v1499, %v1492
    %v1504 = vlaneseq
    %v1505 = vshrl.u32 %v1504, 7
    %v1506 = vsub.s32 0, %v1505
    %v1507 = vrot.slane %v69, %v1506
    %v1510 = vsel %vm70, %v1501, 0
    %v1513 = vsel %vm70, %v1502, 0
    %1515 = vmatprep.subr.mxu0 0.0
    %1516 = vmatpush1.msra.mxu0 %v65
    %1517 = vmatprep.subr.mxu0 0.0
    %1518 = vmatpush1.msra.mxu0 %v66
    %1519 = vmatprep.subr.mxu0 0.0
    %1520 = vmatpush1.msra.mxu0 %v67
    %1521 = vmatprep.subr.mxu0 0.0
    %1522 = vmatpush1.msra.mxu0 %v68
    %1523 = vmatprep.subr.mxu0 0.0
    %1524 = vmatpush1.msra.mxu0 0.0
    %1525 = vmatprep.subr.mxu0 0.0
    %1526 = vmatpush1.msra.mxu0 0.0
    %1527 = vmatprep.subr.mxu0 0.0
    %1528 = vmatpush1.msra.mxu0 0.0
    %1529 = vmatprep.subr.mxu0 0.0
    %1530 = vmatpush1.msra.mxu0 0.0
    %1531 = vmatprep.subr.mxu0 0.0
    %1532 = vmatpush1.msra.mxu0 0.0
    %1533 = vmatprep.subr.mxu0 0.0
    %1534 = vmatpush1.msra.mxu0 0.0
    %1535 = vmatprep.subr.mxu0 0.0
    %1536 = vmatpush1.msra.mxu0 0.0
    %1537 = vmatprep.subr.mxu0 0.0
    %1538 = vmatpush1.msra.mxu0 0.0
    %1539 = vmatprep.subr.mxu0 0.0
    %1540 = vmatpush1.msra.mxu0 0.0
    %1541 = vmatprep.subr.mxu0 0.0
    %1542 = vmatpush1.msra.mxu0 0.0
    %1543 = vmatprep.subr.mxu0 0.0
    %1544 = vmatpush1.msra.mxu0 0.0
    %1545 = vmatprep.subr.mxu0 0.0
    %1546 = vmatpush1.msra.mxu0 0.0
    %1547 = vmatprep.subr.mxu0 0.0
    %1548 = vmatpush1.msra.mxu0 0.0
    %1549 = vmatprep.subr.mxu0 0.0
    %1550 = vmatpush1.msra.mxu0 0.0
    %1551 = vmatprep.subr.mxu0 0.0
    %1552 = vmatpush1.msra.mxu0 0.0
    %1553 = vmatprep.subr.mxu0 0.0
    %1554 = vmatpush1.msra.mxu0 0.0
    %1555 = vmatprep.subr.mxu0 0.0
    %1556 = vmatpush1.msra.mxu0 0.0
    %1557 = vmatprep.subr.mxu0 0.0
    %1558 = vmatpush1.msra.mxu0 0.0
    %1559 = vmatprep.subr.mxu0 0.0
    %1560 = vmatpush1.msra.mxu0 0.0
    %1561 = vmatprep.subr.mxu0 0.0
    %1562 = vmatpush1.msra.mxu0 0.0
    %1563 = vmatprep.subr.mxu0 0.0
    %1564 = vmatpush1.msra.mxu0 0.0
    %1565 = vmatprep.subr.mxu0 0.0
    %1566 = vmatpush1.msra.mxu0 0.0
    %1567 = vmatprep.subr.mxu0 0.0
    %1568 = vmatpush1.msra.mxu0 0.0
    %1569 = vmatprep.subr.mxu0 0.0
    %1570 = vmatpush1.msra.mxu0 0.0
    %1571 = vmatprep.subr.mxu0 0.0
    %1572 = vmatpush1.msra.mxu0 0.0
    %1573 = vmatprep.subr.mxu0 0.0
    %1574 = vmatpush1.msra.mxu0 0.0
    %1575 = vmatprep.subr.mxu0 0.0
    %1576 = vmatpush1.msra.mxu0 0.0
    %1577 = vmatprep.subr.mxu0 0.0
    %1578 = vmatpush1.msra.mxu0 0.0
    %1579 = vmatprep.mubr.f32.mxu0 0.0
    %1580 = vmatmul.mubr.f32.gmra.mrb[0].mxu0 %v1510
    %v1581 = vpop.f32.mrb[0].mxu0
    %v1582 = vadd.f32 %v1507, %v1581
    %v1583 = vpop.f32.mrb[0].mxu0
    %1584 = vmatprep.mubr.f32.mxu0 0.0
    %1585 = vmatmul.mubr.f32.gmra.mrb[0].mxu0 %v1513
    %v1586 = vpop.f32.mrb[0].mxu0
    %v1587 = vadd.f32 %v1507, %v1586
    %v1588 = vpop.f32.mrb[0].mxu0
    %1589 = vdwg.mxu0
    %1590 = vst.msk [vmem:[#allocation8] sm:$0xff] %vm70, %v1582
    %1591 = vst.msk [vmem:[#allocation8 + $0x8] sm:$0xff] %vm70, %v1587
    // Predicated region
    $region30: #{tpu_custom_call.1} parent=1 // pred_check
      _
    $region31: #{tpu_custom_call.1} parent=1 // pred_check_branch
      %1593 = sbr.rel (0) target = $region33
    $region32: #{tpu_custom_call.1} parent=1 // pred_region
      %s1595 = ssub.s32 256, 256
      %1596 = vsyncadd [#allocation4], %s1595
      %s1597 = sshll.u32 [#allocation8], 4
      %s1598 = int_to_ptr.vmem [resolvable:$true] %s1597
      %1603 = dma.vmem_to_hbm [thread:$0]  %s1598, 256, %s4, [#allocation4], 128, 128, 8
    $region33: #{tpu_custom_call.1} parent=1 // pred_fallthru
      _
    // Predicated region
    $region34: #{tpu_custom_call.1} parent=1 // pred_check
      _
    $region35: #{tpu_custom_call.1} parent=1 // pred_check_branch
      %1605 = sbr.rel (0) target = $region37
    $region36: #{tpu_custom_call.1} parent=1 // pred_region
      %1606 = dma.done [#allocation4], 256
    $region37: #{tpu_custom_call.1} parent=1 // pred_fallthru
      _
    %1607 = vsyncpa [#allocation3], 1
    %1608 = vsyncpa [#allocation6], 1
    %1609 = vsyncpa [#allocation4], 1

</llo_original>
